<compile_context>
chip_gen: v6e
topology: v6e:2x2x1
jax: 0.10.0
libtpu: 0.0.40
codegen_flags: <defaults>
</compile_context>

<pallas_src>
import math
from functools import partial, lru_cache

import jax
import jax.numpy as jnp
from jax.experimental import pallas as pl
from jax.experimental.pallas import tpu as pltpu


# ----------------------------- config helpers -----------------------------

@lru_cache(maxsize=None)
def _hw_config():
    """Per-generation tile / VMEM defaults (conservative fallback off-TPU)."""
    kind = ""
    try:
        dev = jax.devices()[0]
        if dev.platform == "tpu":
            kind = dev.device_kind.lower()
    except Exception:
        pass
    big_vmem = any(t in kind for t in ("v4", "v5", "v6"))      # 128 MiB VMEM parts
    if big_vmem:
        cfg = dict(tm=512, tn=512, tk=512, ln_tm=256, ln_tk=512,
                   tq=256, tkv=256, vmem_limit=96 * 1024 * 1024)
        if "v5e" in kind or "v5 lite" in kind or "v5lite" in kind:
            cfg.update(tq=128, tkv=128)                          # v5e MXU is 128x128
    else:
        # v7x: 64 MiB VMEM / 2 TCs -> smaller tiles, lower scoped-VMEM request.
        cfg = dict(tm=256, tn=256, tk=256, ln_tm=128, ln_tk=256,
                   tq=256, tkv=256, vmem_limit=48 * 1024 * 1024)
    return cfg


def _pick_tile(dim, target, align=1):
    """Largest divisor of `dim` that is <= target and align-aligned.

    Falls back to the full dimension (always a legal block extent) rather than
    silently producing an unaligned partial tile.
    """
    target = max(1, min(int(target), int(dim)))
    for t in range(target, 0, -1):
        if dim % t == 0 and (t % align == 0 or t == dim):
            return t
    return dim


def _bspec(shape, index_map, buffers=None):
    """BlockSpec with an optional buffer-count override (single-buffer K-invariants)."""
    if buffers is not None and hasattr(pl, "Buffered"):
        try:
            return pl.BlockSpec(shape, index_map,
                                pipeline_mode=pl.Buffered(buffer_count=buffers))
        except Exception:
            pass
    return pl.BlockSpec(shape, index_map)


def _cost(flops, bytes_accessed, transcendentals=0):
    try:
        return pl.CostEstimate(flops=int(flops),
                               bytes_accessed=int(bytes_accessed),
                               transcendentals=int(transcendentals))
    except Exception:
        return None


# ----------------------------- kernels -----------------------------

def _matmul_kernel(x_ref, w_ref, b_ref, o_ref, acc_ref, *, relu, matmul_dtype):
    """Tiled o = x @ w + b (optional ReLU). Grid (M/tm, N/tn, K/tk), K last."""
    k = pl.program_id(2)

    @pl.when(k == 0)
    def _():
        acc_ref[...] = jnp.zeros_like(acc_ref)

    acc_ref[...] += jnp.dot(x_ref[...].astype(matmul_dtype), w_ref[...],
                            preferred_element_type=jnp.float32)

    @pl.when(k == pl.num_programs(2) - 1)
    def _():
        y = acc_ref[...] + b_ref[...].astype(jnp.float32)
        if relu:
            y = jnp.maximum(y, 0.0)
        o_ref[...] = y.astype(o_ref.dtype)


def _matmul_relu_dropout_kernel(seed_ref, x_ref, w_ref, b_ref, o_ref, acc_ref,
                                *, p, threshold, matmul_dtype):
    """Tiled o = dropout(relu(x @ w + b)) with per-output-tile PRNG seed."""
    k = pl.program_id(2)
    # NOTE: hoisted out of the pl.when body — program_id has no lowering
    # inside lax.cond branches on the interpret/CPU path.
    tile_id = pl.program_id(0) * pl.num_programs(1) + pl.program_id(1)

    @pl.when(k == 0)
    def _():
        acc_ref[...] = jnp.zeros_like(acc_ref)

    acc_ref[...] += jnp.dot(x_ref[...].astype(matmul_dtype), w_ref[...],
                            preferred_element_type=jnp.float32)

    @pl.when(k == pl.num_programs(2) - 1)
    def _():
        y = jnp.maximum(acc_ref[...] + b_ref[...].astype(jnp.float32), 0.0)
        pltpu.prng_seed(seed_ref[0] + tile_id)
        bits = pltpu.bitcast(pltpu.prng_random_bits(y.shape), jnp.uint32)
        keep = bits >= jnp.uint32(threshold)        # P(drop) = threshold / 2^32
        y = jnp.where(keep, y * (1.0 / (1.0 - p)), 0.0)
        o_ref[...] = y.astype(o_ref.dtype)


def _matmul_add_ln_kernel(x_ref, w_ref, b_ref, res_ref, g_ref, bb_ref,
                          o_ref, acc_ref, *, eps, matmul_dtype):
    """Fused o = LayerNorm(res + x @ w + b) * g + bb.  Grid (M/tm, K/tk)."""
    k = pl.program_id(1)

    @pl.when(k == 0)
    def _():
        acc_ref[...] = jnp.zeros_like(acc_ref)

    acc_ref[...] += jnp.dot(x_ref[...].astype(matmul_dtype), w_ref[...],
                            preferred_element_type=jnp.float32)

    @pl.when(k == pl.num_programs(1) - 1)
    def _():
        z = (acc_ref[...] + b_ref[...].astype(jnp.float32)
             + res_ref[...].astype(jnp.float32))
        mean = jnp.mean(z, axis=-1, keepdims=True)
        c = z - mean
        var = jnp.mean(c * c, axis=-1, keepdims=True)
        zn = c * jax.lax.rsqrt(var + eps)
        o_ref[...] = (zn * g_ref[...].astype(jnp.float32)
                      + bb_ref[...].astype(jnp.float32)).astype(o_ref.dtype)


def _flash_attn_kernel(q_ref, k_ref, v_ref, o_ref, m_ref, l_ref, acc_ref,
                       *, matmul_dtype):
    """Flash attention for one (b, h, q-tile); online softmax over KV tiles.

    Blocks arrive as 2-D (tq, dh)/(tkv, dh) refs (leading dims squeezed).
    The 1/sqrt(dh) scale is folded into the Q projection weights at init.
    """
    ki = pl.program_id(3)
    last = pl.num_programs(3) - 1

    @pl.when(ki == 0)
    def _():
        m_ref[...] = jnp.full(m_ref.shape, -jnp.inf, dtype=jnp.float32)
        l_ref[...] = jnp.zeros_like(l_ref)
        acc_ref[...] = jnp.zeros_like(acc_ref)

    q = q_ref[...].astype(matmul_dtype)             # (tq, dh)
    kk = k_ref[...].astype(matmul_dtype)            # (tkv, dh)

    s = jax.lax.dot_general(q, kk, (((1,), (1,)), ((), ())),
                            preferred_element_type=jnp.float32)   # (tq, tkv)

    m_prev = m_ref[...]
    m_new = jnp.maximum(m_prev, jnp.max(s, axis=-1, keepdims=True))
    alpha = jnp.exp(m_prev - m_new)
    p = jnp.exp(s - m_new)
    l_ref[...] = alpha * l_ref[...] + jnp.sum(p, axis=-1, keepdims=True)
    acc_ref[...] = alpha * acc_ref[...] + jnp.dot(
        p.astype(matmul_dtype), v_ref[...].astype(matmul_dtype),
        preferred_element_type=jnp.float32)
    m_ref[...] = m_new

    @pl.when(ki == last)
    def _():
        inv_l = pl.reciprocal(l_ref[...], approx=True)
        o_ref[...] = (acc_ref[...] * inv_l).astype(o_ref.dtype)


# ----------------------------- wrappers -----------------------------

def pallas_linear(x2d, w, b, *, relu=False, matmul_dtype=jnp.float32,
                  out_dtype=None, tm=None, tn=None, tk=None):
    cfg = _hw_config()
    M, K = x2d.shape
    N = w.shape[1]
    tm = _pick_tile(M, tm or cfg["tm"], 8)
    tn = _pick_tile(N, tn or cfg["tn"], 128)
    tk = _pick_tile(K, tk or cfg["tk"], 128)
    out_dtype = out_dtype or x2d.dtype
    return pl.pallas_call(
        partial(_matmul_kernel, relu=relu, matmul_dtype=matmul_dtype),
        out_shape=jax.ShapeDtypeStruct((M, N), out_dtype),
        grid=(M // tm, N // tn, K // tk),
        in_specs=[
            pl.BlockSpec((tm, tk), lambda i, j, k: (i, k)),
            pl.BlockSpec((tk, tn), lambda i, j, k: (k, j)),
            pl.BlockSpec((1, tn), lambda i, j, k: (0, j)),
        ],
        out_specs=pl.BlockSpec((tm, tn), lambda i, j, k: (i, j)),
        scratch_shapes=[pltpu.VMEM((tm, tn), jnp.float32)],
        compiler_params=pltpu.CompilerParams(
            dimension_semantics=("parallel", "parallel", "arbitrary"),
            vmem_limit_bytes=cfg["vmem_limit"]),
        cost_estimate=_cost(
            2 * M * N * K,
            M * K * x2d.dtype.itemsize + K * N * w.dtype.itemsize
            + M * N * jnp.dtype(out_dtype).itemsize + N * 4),
    )(x2d, w, b.reshape(1, N))


def pallas_linear_relu_dropout(x2d, w, b, *, p, training, seed=0,
                               matmul_dtype=jnp.float32, out_dtype=None,
                               tm=None, tn=None, tk=None):
    if (not training) or p <= 0.0:
        return pallas_linear(x2d, w, b, relu=True, matmul_dtype=matmul_dtype,
                             out_dtype=out_dtype, tm=tm, tn=tn, tk=tk)
    cfg = _hw_config()
    M, K = x2d.shape
    N = w.shape[1]
    tm = _pick_tile(M, tm or cfg["tm"], 8)
    tn = _pick_tile(N, tn or cfg["tn"], 128)
    tk = _pick_tile(K, tk or cfg["tk"], 128)
    out_dtype = out_dtype or x2d.dtype
    threshold = min(int(p * (1 << 32)), (1 << 32) - 1)
    return pl.pallas_call(
        partial(_matmul_relu_dropout_kernel, p=p, threshold=threshold,
                matmul_dtype=matmul_dtype),
        out_shape=jax.ShapeDtypeStruct((M, N), out_dtype),
        grid=(M // tm, N // tn, K // tk),
        in_specs=[
            pl.BlockSpec(memory_space=pltpu.MemorySpace.SMEM),
            pl.BlockSpec((tm, tk), lambda i, j, k: (i, k)),
            pl.BlockSpec((tk, tn), lambda i, j, k: (k, j)),
            pl.BlockSpec((1, tn), lambda i, j, k: (0, j)),
        ],
        out_specs=pl.BlockSpec((tm, tn), lambda i, j, k: (i, j)),
        scratch_shapes=[pltpu.VMEM((tm, tn), jnp.float32)],
        compiler_params=pltpu.CompilerParams(
            dimension_semantics=("parallel", "parallel", "arbitrary"),
            vmem_limit_bytes=cfg["vmem_limit"]),
        cost_estimate=_cost(
            2 * M * N * K,
            M * K * x2d.dtype.itemsize + K * N * w.dtype.itemsize
            + M * N * jnp.dtype(out_dtype).itemsize + N * 4),
    )(jnp.array([seed], jnp.int32), x2d, w, b.reshape(1, N))


def pallas_matmul_add_ln(x2d, w, b, residual, gamma, beta, *, eps=1e-5,
                         matmul_dtype=jnp.float32, tm=None, tk=None):
    """Fused (x @ w + b) + residual -> LayerNorm -> affine.  N kept whole."""
    cfg = _hw_config()
    M, K = x2d.shape
    N = w.shape[1]
    tm = _pick_tile(M, tm or cfg["ln_tm"], 8)
    tk = _pick_tile(K, tk or cfg["ln_tk"], 128)
    return pl.pallas_call(
        partial(_matmul_add_ln_kernel, eps=eps, matmul_dtype=matmul_dtype),
        out_shape=jax.ShapeDtypeStruct((M, N), residual.dtype),
        grid=(M // tm, K // tk),
        in_specs=[
            pl.BlockSpec((tm, tk), lambda i, k: (i, k)),
            pl.BlockSpec((tk, N), lambda i, k: (k, 0)),
            # K-invariant operands: single-buffered to relieve VMEM pressure.
            _bspec((1, N), lambda i, k: (0, 0), buffers=1),
            _bspec((tm, N), lambda i, k: (i, 0), buffers=1),   # residual
            _bspec((1, N), lambda i, k: (0, 0), buffers=1),
            _bspec((1, N), lambda i, k: (0, 0), buffers=1),
        ],
        out_specs=pl.BlockSpec((tm, N), lambda i, k: (i, 0)),
        scratch_shapes=[pltpu.VMEM((tm, N), jnp.float32)],
        compiler_params=pltpu.CompilerParams(
            dimension_semantics=("parallel", "arbitrary"),
            vmem_limit_bytes=cfg["vmem_limit"]),
        cost_estimate=_cost(
            2 * M * N * K + 10 * M * N,
            M * K * x2d.dtype.itemsize + K * N * w.dtype.itemsize
            + M * N * residual.dtype.itemsize + 2 * M * N * 4,
            transcendentals=M),
    )(x2d, w, b.reshape(1, N), residual, gamma.reshape(1, N), beta.reshape(1, N))


def _flash_attention_call(specs, out_shape, grid, args, *, tq, dh, matmul_dtype,
                          flops, bytes_accessed, transc):
    q_spec, k_spec, v_spec, o_spec = specs
    return pl.pallas_call(
        partial(_flash_attn_kernel, matmul_dtype=matmul_dtype),
        out_shape=out_shape,
        grid=grid,
        in_specs=[q_spec, k_spec, v_spec],
        out_specs=o_spec,
        scratch_shapes=[pltpu.VMEM((tq, 1), jnp.float32),
                        pltpu.VMEM((tq, 1), jnp.float32),
                        pltpu.VMEM((tq, dh), jnp.float32)],
        compiler_params=pltpu.CompilerParams(
            dimension_semantics=("parallel", "parallel", "parallel", "arbitrary")),
        cost_estimate=_cost(flops, bytes_accessed, transc),
    )(*args)


def pallas_flash_attention_slab(qkv, B, S, H, dh, *, matmul_dtype=jnp.float32,
                                tq=None, tkv=None):
    """Lane-dense, transpose-free attention straight off the (B*S, 3*D) slab.

    Requires dh % 128 == 0 (and S % 8 == 0): every Q/K/V block and the output
    store are lane-dense and no XLA transpose is needed around the kernel.
    Output is written directly in (B*S, D) layout.
    """
    cfg = _hw_config()
    D = H * dh
    tq = _pick_tile(S, tq or cfg["tq"], 8)
    tkv = _pick_tile(S, tkv or cfg["tkv"], 8)
    nq, nk = S // tq, S // tkv
    q_spec = pl.BlockSpec((tq, dh), lambda b, h, qi, ki: (b * nq + qi, h))
    k_spec = pl.BlockSpec((tkv, dh), lambda b, h, qi, ki: (b * nk + ki, H + h))
    v_spec = pl.BlockSpec((tkv, dh), lambda b, h, qi, ki: (b * nk + ki, 2 * H + h))
    o_spec = pl.BlockSpec((tq, dh), lambda b, h, qi, ki: (b * nq + qi, h))
    return _flash_attention_call(
        (q_spec, k_spec, v_spec, o_spec),
        jax.ShapeDtypeStruct((B * S, D), qkv.dtype),
        (B, H, nq, nk), (qkv, qkv, qkv),
        tq=tq, dh=dh, matmul_dtype=matmul_dtype,
        flops=4 * B * H * S * S * dh,
        bytes_accessed=4 * B * S * D * qkv.dtype.itemsize,
        transc=B * H * S * S)


def pallas_flash_attention_packed(qkvh, H, *, matmul_dtype=jnp.float32,
                                  tq=None, tkv=None):
    """Fallback path. qkvh: (B, 3*H, S, dh) packed [q | k | v] heads -> (B,H,S,dh)."""
    cfg = _hw_config()
    B, _, S, dh = qkvh.shape
    tq = _pick_tile(S, tq or cfg["tq"], 8)
    tkv = _pick_tile(S, tkv or cfg["tkv"], 8)
    q_spec = pl.BlockSpec((None, None, tq, dh), lambda b, h, qi, ki: (b, h, qi, 0))
    k_spec = pl.BlockSpec((None, None, tkv, dh), lambda b, h, qi, ki: (b, H + h, ki, 0))
    v_spec = pl.BlockSpec((None, None, tkv, dh), lambda b, h, qi, ki: (b, 2 * H + h, ki, 0))
    o_spec = pl.BlockSpec((None, None, tq, dh), lambda b, h, qi, ki: (b, h, qi, 0))
    D = H * dh
    return _flash_attention_call(
        (q_spec, k_spec, v_spec, o_spec),
        jax.ShapeDtypeStruct((B, H, S, dh), qkvh.dtype),
        (B, H, S // tq, S // tkv), (qkvh, qkvh, qkvh),
        tq=tq, dh=dh, matmul_dtype=matmul_dtype,
        flops=4 * B * H * S * S * dh,
        bytes_accessed=4 * B * S * D * qkvh.dtype.itemsize,
        transc=B * H * S * S)


# ----------------------------- params -----------------------------

def init_params(key, d_model, dim_feedforward):
    """PyTorch-layout parameters (weights are (out, in))."""
    ks = jax.random.split(key, 12)
    s = 0.05
    n = lambda k, shp: (jax.random.normal(k, shp, jnp.float32) * s)
    return dict(
        in_proj_w=n(ks[0], (3 * d_model, d_model)),
        in_proj_b=n(ks[1], (3 * d_model,)),
        out_proj_w=n(ks[2], (d_model, d_model)),
        out_proj_b=n(ks[3], (d_model,)),
        lin1_w=n(ks[4], (dim_feedforward, d_model)),
        lin1_b=n(ks[5], (dim_feedforward,)),
        lin2_w=n(ks[6], (d_model, dim_feedforward)),
        lin2_b=n(ks[7], (d_model,)),
        ln1_w=1.0 + n(ks[8], (d_model,)),
        ln1_b=n(ks[9], (d_model,)),
        ln2_w=1.0 + n(ks[10], (d_model,)),
        ln2_b=n(ks[11], (d_model,)),
    )


def prepare_params(p, nhead, d_model, matmul_dtype=jnp.bfloat16):
    """One-time prep: transpose weights to (in, out), fold 1/sqrt(dh) into the
    Q slice of in_proj, and pre-cast matmul weights to the MXU operand dtype
    (bf16 recommended on v6e/v7x). Biases / LN params stay fp32."""
    dh = d_model // nhead
    scale = 1.0 / math.sqrt(dh)
    row_scale = jnp.concatenate([
        jnp.full((d_model,), scale, jnp.float32),
        jnp.ones((2 * d_model,), jnp.float32)])
    in_w = p["in_proj_w"] * row_scale[:, None]
    in_b = p["in_proj_b"] * row_scale
    cast = lambda w: jnp.asarray(w.T, dtype=matmul_dtype)
    # TODO(synk): on v7x, fp8 storage (per-channel scaled) for lin1_w/lin2_w
    # would halve FFN weight DMA again; not implemented here.
    return dict(
        in_proj_w=cast(in_w),                      # (D, 3D)
        in_proj_b=in_b,
        out_proj_w=cast(p["out_proj_w"]),
        out_proj_b=p["out_proj_b"],
        lin1_w=cast(p["lin1_w"]),
        lin1_b=p["lin1_b"],
        lin2_w=cast(p["lin2_w"]),
        lin2_b=p["lin2_b"],
        ln1_w=p["ln1_w"], ln1_b=p["ln1_b"],
        ln2_w=p["ln2_w"], ln2_b=p["ln2_b"],
    )


# ----------------------------- model -----------------------------

def transformer_block_forward(x, params, *, nhead, dropout_p=0.1,
                              training=False, matmul_dtype=jnp.bfloat16,
                              dropout_seed=0):
    B, S, D = x.shape
    H = nhead
    dh = D // H
    interm_dtype = jnp.bfloat16 if matmul_dtype == jnp.bfloat16 else x.dtype
    x2 = x.reshape(B * S, D)

    # --- self attention: QKV projection -> flash SDPA -> fused out_proj+add+LN1 ---
    qkv = pallas_linear(x2, params["in_proj_w"], params["in_proj_b"],
                        matmul_dtype=matmul_dtype,
                        out_dtype=interm_dtype)                      # (B*S, 3D)

    if dh % 128 == 0 and S % 8 == 0:
        # Lane-dense, transpose-free path: read Q/K/V straight from the slab,
        # write attention output directly in (B*S, D) layout.
        attn2 = pallas_flash_attention_slab(qkv, B, S, H, dh,
                                            matmul_dtype=matmul_dtype)
    else:
        # TODO(synk): dh < 128 (e.g. 64) lane-dense attention (2 heads / block)
        # would avoid masked stores; small-head fallback keeps one packing
        # transpose in and one out.
        qkvh = qkv.reshape(B, S, 3 * H, dh).transpose(0, 2, 1, 3)    # (B,3H,S,dh)
        attn = pallas_flash_attention_packed(qkvh, H, matmul_dtype=matmul_dtype)
        attn2 = attn.transpose(0, 2, 1, 3).reshape(B * S, D)

    # fused: LayerNorm(x + attn2 @ Wout + bout) * g1 + b1   (residual stream fp32)
    x2 = pallas_matmul_add_ln(attn2, params["out_proj_w"], params["out_proj_b"],
                              x2, params["ln1_w"], params["ln1_b"],
                              matmul_dtype=matmul_dtype)

    # --- FFN: fused linear+relu(+dropout), then fused linear2 + residual + LN2 ---
    h = pallas_linear_relu_dropout(x2, params["lin1_w"], params["lin1_b"],
                                   p=dropout_p, training=training,
                                   seed=dropout_seed, matmul_dtype=matmul_dtype,
                                   out_dtype=interm_dtype)
    x2 = pallas_matmul_add_ln(h, params["lin2_w"], params["lin2_b"],
                              x2, params["ln2_w"], params["ln2_b"],
                              matmul_dtype=matmul_dtype)
    return x2.reshape(B, S, D)


# ----------------------------- pure-JAX reference -----------------------------

def reference_forward(x, torch_params, nhead, eps=1e-5):
    p = torch_params
    B, S, D = x.shape
    dh = D // nhead
    x2 = x.reshape(B * S, D)
    qkv = x2 @ p["in_proj_w"].T + p["in_proj_b"]
    q, k, v = jnp.split(qkv, 3, axis=-1)
    heads = lambda t: t.reshape(B, S, nhead, dh).transpose(0, 2, 1, 3)
    qh, kh, vh = heads(q), heads(k), heads(v)
    s = jnp.einsum("bhqd,bhkd->bhqk", qh, kh) / math.sqrt(dh)
    pr = jax.nn.softmax(s, axis=-1)
    a = jnp.einsum("bhqk,bhkd->bhqd", pr, vh).transpose(0, 2, 1, 3).reshape(B * S, D)
    a = a @ p["out_proj_w"].T + p["out_proj_b"]

    def ln_add(x_, y_, w_, b_):
        z = x_ + y_
        mu = z.mean(-1, keepdims=True)
        var = ((z - mu) ** 2).mean(-1, keepdims=True)
        return (z - mu) / jnp.sqrt(var + eps) * w_ + b_

    x2 = ln_add(x2, a, p["ln1_w"], p["ln1_b"])
    hh = jax.nn.relu(x2 @ p["lin1_w"].T + p["lin1_b"])
    ff = hh @ p["lin2_w"].T + p["lin2_b"]
    x2 = ln_add(x2, ff, p["ln2_w"], p["ln2_b"])
    return x2.reshape(B, S, D)


# ----------------------------- main -----------------------------

if __name__ == "__main__":
    key = jax.random.PRNGKey(0)
    k1, k2, k3, k4 = jax.random.split(key, 4)

    # ---- Case 1: tiny shapes (exercises the small-head fallback path) ----
    B, S, D, H, FF = 2, 8, 32, 4, 64
    x = jax.random.normal(k1, (B, S, D), jnp.float32)
    torch_params = init_params(k2, D, FF)
    ref = reference_forward(x, torch_params, nhead=H)

    params_f32 = prepare_params(torch_params, H, D, matmul_dtype=jnp.float32)
    fwd_f32 = jax.jit(partial(transformer_block_forward, nhead=H, dropout_p=0.1,
                              training=False, matmul_dtype=jnp.float32))
    out = jax.block_until_ready(fwd_f32(x, params_f32))
    assert out.shape == (B, S, D)
    err = float(jnp.max(jnp.abs(out - ref)))
    assert err < 2e-2, f"small-shape fp32 max abs err {err}"

    params_bf16 = prepare_params(torch_params, H, D, matmul_dtype=jnp.bfloat16)
    fwd_bf16 = jax.jit(partial(transformer_block_forward, nhead=H, dropout_p=0.1,
                               training=False, matmul_dtype=jnp.bfloat16))
    out_bf = jax.block_until_ready(fwd_bf16(x, params_bf16))
    err_bf = float(jnp.max(jnp.abs(out_bf.astype(jnp.float32) - ref)))
    assert err_bf < 2.5e-1, f"small-shape bf16 max abs err {err_bf}"

    # ---- Case 2: aligned shapes (dh=128 lane-dense, transpose-free attention) ----
    B2, S2, D2, H2, FF2 = 2, 128, 256, 2, 512
    x2in = jax.random.normal(k3, (B2, S2, D2), jnp.float32)
    torch_params2 = init_params(k4, D2, FF2)
    ref2 = reference_forward(x2in, torch_params2, nhead=H2)

    params2_f32 = prepare_params(torch_params2, H2, D2, matmul_dtype=jnp.float32)
    fwd2_f32 = jax.jit(partial(transformer_block_forward, nhead=H2, dropout_p=0.1,
                               training=False, matmul_dtype=jnp.float32))
    out2 = jax.block_until_ready(fwd2_f32(x2in, params2_f32))
    assert out2.shape == (B2, S2, D2)
    err2 = float(jnp.max(jnp.abs(out2 - ref2)))
    assert err2 < 2e-2, f"aligned-shape fp32 max abs err {err2}"

    params2_bf16 = prepare_params(torch_params2, H2, D2, matmul_dtype=jnp.bfloat16)
    fwd2_bf16 = jax.jit(partial(transformer_block_forward, nhead=H2, dropout_p=0.1,
                                training=False, matmul_dtype=jnp.bfloat16))
    out2_bf = jax.block_until_ready(fwd2_bf16(x2in, params2_bf16))
    err2_bf = float(jnp.max(jnp.abs(out2_bf.astype(jnp.float32) - ref2)))
    assert err2_bf < 3e-1, f"aligned-shape bf16 max abs err {err2_bf}"

    print("KERNEL_OK")
</pallas_src>

<mosaic_0001>
module attributes {stable_mosaic.version = 11 : i64} {
  func.func @_matmul_kernel(%arg0: i32, %arg1: i32, %arg2: i32, %arg3: memref<16x32xf32, #tpu.memory_space<vmem>>, %arg4: memref<32x96xf32, #tpu.memory_space<vmem>>, %arg5: memref<1x96xf32, #tpu.memory_space<vmem>>, %arg6: memref<16x96xf32, #tpu.memory_space<vmem>>, %arg7: memref<16x96xf32, #tpu.memory_space<vmem>>) attributes {dimension_semantics = [#tpu.dimension_semantics<parallel>, #tpu.dimension_semantics<parallel>, #tpu.dimension_semantics<arbitrary>], iteration_bounds = array<i64: 1, 1, 1>, scalar_prefetch = 0 : i64, scratch_operands = 1 : i64, tpu.core_type = #tpu.core_type<tc>, window_params = [{transform_indices = @transform_0, window_bounds = array<i64: 16, 32>}, {transform_indices = @transform_1, window_bounds = array<i64: 32, 96>}, {transform_indices = @transform_2, window_bounds = array<i64: 1, 96>}, {transform_indices = @transform_3, window_bounds = array<i64: 16, 96>}]} {
    %c0_i32 = arith.constant 0 : i32
    %0 = arith.cmpi eq, %arg2, %c0_i32 : i32
    %1 = arith.extui %0 : i1 to i32
    %c0_i32_0 = arith.constant 0 : i32
    %2 = arith.cmpi ne, %1, %c0_i32_0 : i32
    scf.if %2 {
      %cst_10 = arith.constant 0.000000e+00 : f32
      %12 = vector.broadcast %cst_10 : f32 to vector<16x96xf32>
      %c0_11 = arith.constant 0 : index
      %c0_12 = arith.constant 0 : index
      %13 = vector.load %arg7[%c0_11, %c0_12] : memref<16x96xf32, #tpu.memory_space<vmem>>, vector<16x96xf32>
      tpu.vector_store %arg7[%c0_11, %c0_12], %12 {strides = array<i32>} : memref<16x96xf32, #tpu.memory_space<vmem>>, vector<16x96xf32>,
    } else {
    }
    %c0 = arith.constant 0 : index
    %c0_1 = arith.constant 0 : index
    %3 = vector.load %arg7[%c0, %c0_1] : memref<16x96xf32, #tpu.memory_space<vmem>>, vector<16x96xf32>
    %c0_2 = arith.constant 0 : index
    %c0_3 = arith.constant 0 : index
    %4 = vector.load %arg3[%c0_2, %c0_3] : memref<16x32xf32, #tpu.memory_space<vmem>>, vector<16x32xf32>
    %c0_4 = arith.constant 0 : index
    %c0_5 = arith.constant 0 : index
    %5 = vector.load %arg4[%c0_4, %c0_5] : memref<32x96xf32, #tpu.memory_space<vmem>>, vector<32x96xf32>
    %cst = arith.constant dense<0.000000e+00> : vector<16x96xf32>
    %6 = tpu.matmul %4, %5, %cst {dimension_numbers = #tpu.dot_dimension_numbers<[1], [0], [0], [1], [0, 0, 1, 1], [], []>} : vector<16x32xf32>, vector<32x96xf32>, vector<16x96xf32> -> vector<16x96xf32>
    %7 = arith.addf %3, %6 : vector<16x96xf32>
    %c0_6 = arith.constant 0 : index
    %c0_7 = arith.constant 0 : index
    %8 = vector.load %arg7[%c0_6, %c0_7] : memref<16x96xf32, #tpu.memory_space<vmem>>, vector<16x96xf32>
    tpu.vector_store %arg7[%c0_6, %c0_7], %7 {strides = array<i32>} : memref<16x96xf32, #tpu.memory_space<vmem>>, vector<16x96xf32>,
    %c0_i32_8 = arith.constant 0 : i32
    %9 = arith.cmpi eq, %arg2, %c0_i32_8 : i32
    %10 = arith.extui %9 : i1 to i32
    %c0_i32_9 = arith.constant 0 : i32
    %11 = arith.cmpi ne, %10, %c0_i32_9 : i32
    scf.if %11 {
      %c0_10 = arith.constant 0 : index
      %c0_11 = arith.constant 0 : index
      %12 = vector.load %arg7[%c0_10, %c0_11] : memref<16x96xf32, #tpu.memory_space<vmem>>, vector<16x96xf32>
      %c0_12 = arith.constant 0 : index
      %c0_13 = arith.constant 0 : index
      %13 = vector.load %arg5[%c0_12, %c0_13] : memref<1x96xf32, #tpu.memory_space<vmem>>, vector<1x96xf32>
      %14 = vector.broadcast %13 : vector<1x96xf32> to vector<16x96xf32>
      %15 = arith.addf %12, %14 : vector<16x96xf32>
      %c0_14 = arith.constant 0 : index
      %c0_15 = arith.constant 0 : index
      %16 = vector.load %arg6[%c0_14, %c0_15] : memref<16x96xf32, #tpu.memory_space<vmem>>, vector<16x96xf32>
      tpu.vector_store %arg6[%c0_14, %c0_15], %15 {strides = array<i32>} : memref<16x96xf32, #tpu.memory_space<vmem>>, vector<16x96xf32>,
    } else {
    }
    return
  }
  func.func @transform_0(%arg0: i32, %arg1: i32, %arg2: i32) -> (i32, i32) {
    %c0_i32 = arith.constant 0 : i32
    return %arg0, %arg2 : i32, i32
  }
  func.func @transform_1(%arg0: i32, %arg1: i32, %arg2: i32) -> (i32, i32) {
    %c0_i32 = arith.constant 0 : i32
    return %arg2, %arg1 : i32, i32
  }
  func.func @transform_2(%arg0: i32, %arg1: i32, %arg2: i32) -> (i32, i32) {
    %c0_i32 = arith.constant 0 : i32
    %c0_i32_0 = arith.constant 0 : i32
    return %c0_i32, %arg1 : i32, i32
  }
  func.func @transform_3(%arg0: i32, %arg1: i32, %arg2: i32) -> (i32, i32) {
    %c0_i32 = arith.constant 0 : i32
    return %arg0, %arg1 : i32, i32
  }
}

module attributes {stable_mosaic.version = 11 : i64} {
  func.func @_flash_attn_kernel(%arg0: i32, %arg1: i32, %arg2: i32, %arg3: i32, %arg4: memref<1x1x8x8xf32, #tpu.memory_space<vmem>>, %arg5: memref<1x1x8x8xf32, #tpu.memory_space<vmem>>, %arg6: memref<1x1x8x8xf32, #tpu.memory_space<vmem>>, %arg7: memref<1x1x8x8xf32, #tpu.memory_space<vmem>>, %arg8: memref<8x1xf32, #tpu.memory_space<vmem>>, %arg9: memref<8x1xf32, #tpu.memory_space<vmem>>, %arg10: memref<8x8xf32, #tpu.memory_space<vmem>>) attributes {dimension_semantics = [#tpu.dimension_semantics<parallel>, #tpu.dimension_semantics<parallel>, #tpu.dimension_semantics<parallel>, #tpu.dimension_semantics<arbitrary>], iteration_bounds = array<i64: 2, 4, 1, 1>, scalar_prefetch = 0 : i64, scratch_operands = 3 : i64, tpu.core_type = #tpu.core_type<tc>, window_params = [{transform_indices = @transform_0, window_bounds = array<i64: 1, 1, 8, 8>}, {transform_indices = @transform_1, window_bounds = array<i64: 1, 1, 8, 8>}, {transform_indices = @transform_2, window_bounds = array<i64: 1, 1, 8, 8>}, {transform_indices = @transform_3, window_bounds = array<i64: 1, 1, 8, 8>}]} {
    %c0_i32 = arith.constant 0 : i32
    %0 = arith.cmpi eq, %arg3, %c0_i32 : i32
    %1 = arith.extui %0 : i1 to i32
    %c0_i32_0 = arith.constant 0 : i32
    %2 = arith.cmpi ne, %1, %c0_i32_0 : i32
    scf.if %2 {
      %cst_29 = arith.constant 0xFF800000 : f32
      %35 = vector.broadcast %cst_29 : f32 to vector<8x1xf32>
      %c0_30 = arith.constant 0 : index
      %c0_31 = arith.constant 0 : index
      %36 = vector.load %arg8[%c0_30, %c0_31] : memref<8x1xf32, #tpu.memory_space<vmem>>, vector<8x1xf32>
      tpu.vector_store %arg8[%c0_30, %c0_31], %35 {strides = array<i32>} : memref<8x1xf32, #tpu.memory_space<vmem>>, vector<8x1xf32>,
      %cst_32 = arith.constant 0.000000e+00 : f32
      %37 = vector.broadcast %cst_32 : f32 to vector<8x1xf32>
      %c0_33 = arith.constant 0 : index
      %c0_34 = arith.constant 0 : index
      %38 = vector.load %arg9[%c0_33, %c0_34] : memref<8x1xf32, #tpu.memory_space<vmem>>, vector<8x1xf32>
      tpu.vector_store %arg9[%c0_33, %c0_34], %37 {strides = array<i32>} : memref<8x1xf32, #tpu.memory_space<vmem>>, vector<8x1xf32>,
      %cst_35 = arith.constant 0.000000e+00 : f32
      %39 = vector.broadcast %cst_35 : f32 to vector<8x8xf32>
      %c0_36 = arith.constant 0 : index
      %c0_37 = arith.constant 0 : index
      %40 = vector.load %arg10[%c0_36, %c0_37] : memref<8x8xf32, #tpu.memory_space<vmem>>, vector<8x8xf32>
      tpu.vector_store %arg10[%c0_36, %c0_37], %39 {strides = array<i32>} : memref<8x8xf32, #tpu.memory_space<vmem>>, vector<8x8xf32>,
    } else {
    }
    %c0 = arith.constant 0 : index
    %c0_1 = arith.constant 0 : index
    %c0_2 = arith.constant 0 : index
    %c0_3 = arith.constant 0 : index
    %3 = vector.load %arg4[%c0, %c0_1, %c0_2, %c0_3] : memref<1x1x8x8xf32, #tpu.memory_space<vmem>>, vector<1x1x8x8xf32>
    %4 = vector.shape_cast %3 : vector<1x1x8x8xf32> to vector<8x8xf32>
    %c0_4 = arith.constant 0 : index
    %c0_5 = arith.constant 0 : index
    %c0_6 = arith.constant 0 : index
    %c0_7 = arith.constant 0 : index
    %5 = vector.load %arg5[%c0_4, %c0_5, %c0_6, %c0_7] : memref<1x1x8x8xf32, #tpu.memory_space<vmem>>, vector<1x1x8x8xf32>
    %6 = vector.shape_cast %5 : vector<1x1x8x8xf32> to vector<8x8xf32>
    %cst = arith.constant dense<0.000000e+00> : vector<8x8xf32>
    %7 = tpu.matmul %4, %6, %cst {dimension_numbers = #tpu.dot_dimension_numbers<[1], [1], [0], [0], [0, 0, 1, 0], [], []>} : vector<8x8xf32>, vector<8x8xf32>, vector<8x8xf32> -> vector<8x8xf32>
    %c0_8 = arith.constant 0 : index
    %c0_9 = arith.constant 0 : index
    %8 = vector.load %arg8[%c0_8, %c0_9] : memref<8x1xf32, #tpu.memory_space<vmem>>, vector<8x1xf32>
    %cst_10 = arith.constant dense<0xFF800000> : vector<8xf32>
    %9 = vector.multi_reduction <maximumf>, %7, %cst_10 [1] : vector<8x8xf32> to vector<8xf32>
    %10 = vector.shape_cast %9 : vector<8xf32> to vector<8x1xf32>
    %11 = arith.maximumf %8, %10 : vector<8x1xf32>
    %12 = arith.subf %8, %11 : vector<8x1xf32>
    %13 = math.exp %12 : vector<8x1xf32>
    %14 = vector.broadcast %11 : vector<8x1xf32> to vector<8x8xf32>
    %15 = arith.subf %7, %14 : vector<8x8xf32>
    %16 = math.exp %15 : vector<8x8xf32>
    %c0_11 = arith.constant 0 : index
    %c0_12 = arith.constant 0 : index
    %17 = vector.load %arg9[%c0_11, %c0_12] : memref<8x1xf32, #tpu.memory_space<vmem>>, vector<8x1xf32>
    %18 = arith.mulf %13, %17 : vector<8x1xf32>
    %cst_13 = arith.constant dense<0.000000e+00> : vector<8xf32>
    %19 = vector.multi_reduction <add>, %16, %cst_13 [1] : vector<8x8xf32> to vector<8xf32>
    %20 = vector.shape_cast %19 : vector<8xf32> to vector<8x1xf32>
    %21 = arith.addf %18, %20 : vector<8x1xf32>
    %c0_14 = arith.constant 0 : index
    %c0_15 = arith.constant 0 : index
    %22 = vector.load %arg9[%c0_14, %c0_15] : memref<8x1xf32, #tpu.memory_space<vmem>>, vector<8x1xf32>
    tpu.vector_store %arg9[%c0_14, %c0_15], %21 {strides = array<i32>} : memref<8x1xf32, #tpu.memory_space<vmem>>, vector<8x1xf32>,
    %c0_16 = arith.constant 0 : index
    %c0_17 = arith.constant 0 : index
    %23 = vector.load %arg10[%c0_16, %c0_17] : memref<8x8xf32, #tpu.memory_space<vmem>>, vector<8x8xf32>
    %24 = vector.broadcast %13 : vector<8x1xf32> to vector<8x8xf32>
    %25 = arith.mulf %24, %23 : vector<8x8xf32>
    %c0_18 = arith.constant 0 : index
    %c0_19 = arith.constant 0 : index
    %c0_20 = arith.constant 0 : index
    %c0_21 = arith.constant 0 : index
    %26 = vector.load %arg6[%c0_18, %c0_19, %c0_20, %c0_21] : memref<1x1x8x8xf32, #tpu.memory_space<vmem>>, vector<1x1x8x8xf32>
    %27 = vector.shape_cast %26 : vector<1x1x8x8xf32> to vector<8x8xf32>
    %cst_22 = arith.constant dense<0.000000e+00> : vector<8x8xf32>
    %28 = tpu.matmul %16, %27, %cst_22 {dimension_numbers = #tpu.dot_dimension_numbers<[1], [0], [0], [1], [0, 0, 1, 1], [], []>} : vector<8x8xf32>, vector<8x8xf32>, vector<8x8xf32> -> vector<8x8xf32>
    %29 = arith.addf %25, %28 : vector<8x8xf32>
    %c0_23 = arith.constant 0 : index
    %c0_24 = arith.constant 0 : index
    %30 = vector.load %arg10[%c0_23, %c0_24] : memref<8x8xf32, #tpu.memory_space<vmem>>, vector<8x8xf32>
    tpu.vector_store %arg10[%c0_23, %c0_24], %29 {strides = array<i32>} : memref<8x8xf32, #tpu.memory_space<vmem>>, vector<8x8xf32>,
    %c0_25 = arith.constant 0 : index
    %c0_26 = arith.constant 0 : index
    %31 = vector.load %arg8[%c0_25, %c0_26] : memref<8x1xf32, #tpu.memory_space<vmem>>, vector<8x1xf32>
    tpu.vector_store %arg8[%c0_25, %c0_26], %11 {strides = array<i32>} : memref<8x1xf32, #tpu.memory_space<vmem>>, vector<8x1xf32>,
    %c0_i32_27 = arith.constant 0 : i32
    %32 = arith.cmpi eq, %arg3, %c0_i32_27 : i32
    %33 = arith.extui %32 : i1 to i32
    %c0_i32_28 = arith.constant 0 : i32
    %34 = arith.cmpi ne, %33, %c0_i32_28 : i32
    scf.if %34 {
      %c0_29 = arith.constant 0 : index
      %c0_30 = arith.constant 0 : index
      %35 = vector.load %arg9[%c0_29, %c0_30] : memref<8x1xf32, #tpu.memory_space<vmem>>, vector<8x1xf32>
      %36 = tpu.reciprocal %35 {approx = true} : vector<8x1xf32> -> vector<8x1xf32>
      %c0_31 = arith.constant 0 : index
      %c0_32 = arith.constant 0 : index
      %37 = vector.load %arg10[%c0_31, %c0_32] : memref<8x8xf32, #tpu.memory_space<vmem>>, vector<8x8xf32>
      %38 = vector.broadcast %36 : vector<8x1xf32> to vector<8x8xf32>
      %39 = arith.mulf %37, %38 : vector<8x8xf32>
      %c0_33 = arith.constant 0 : index
      %c0_34 = arith.constant 0 : index
      %c0_35 = arith.constant 0 : index
      %c0_36 = arith.constant 0 : index
      %40 = vector.load %arg7[%c0_33, %c0_34, %c0_35, %c0_36] : memref<1x1x8x8xf32, #tpu.memory_space<vmem>>, vector<1x1x8x8xf32>
      %41 = vector.shape_cast %40 : vector<1x1x8x8xf32> to vector<8x8xf32>
      %42 = vector.shape_cast %39 : vector<8x8xf32> to vector<1x1x8x8xf32>
      tpu.vector_store %arg7[%c0_33, %c0_34, %c0_35, %c0_36], %42 {strides = array<i32>} : memref<1x1x8x8xf32, #tpu.memory_space<vmem>>, vector<1x1x8x8xf32>,
    } else {
    }
    return
  }
  func.func @transform_0(%arg0: i32, %arg1: i32, %arg2: i32, %arg3: i32) -> (i32, i32, i32, i32) {
    %c0_i32 = arith.constant 0 : i32
    %c0_i32_0 = arith.constant 0 : i32
    return %arg0, %arg1, %arg2, %c0_i32 : i32, i32, i32, i32
  }
  func.func @transform_1(%arg0: i32, %arg1: i32, %arg2: i32, %arg3: i32) -> (i32, i32, i32, i32) {
    %c4_i32 = arith.constant 4 : i32
    %0 = arith.addi %c4_i32, %arg1 : i32
    %c0_i32 = arith.constant 0 : i32
    %c0_i32_0 = arith.constant 0 : i32
    return %arg0, %0, %arg3, %c0_i32 : i32, i32, i32, i32
  }
  func.func @transform_2(%arg0: i32, %arg1: i32, %arg2: i32, %arg3: i32) -> (i32, i32, i32, i32) {
    %c8_i32 = arith.constant 8 : i32
    %0 = arith.addi %c8_i32, %arg1 : i32
    %c0_i32 = arith.constant 0 : i32
    %c0_i32_0 = arith.constant 0 : i32
    return %arg0, %0, %arg3, %c0_i32 : i32, i32, i32, i32
  }
  func.func @transform_3(%arg0: i32, %arg1: i32, %arg2: i32, %arg3: i32) -> (i32, i32, i32, i32) {
    %c0_i32 = arith.constant 0 : i32
    %c0_i32_0 = arith.constant 0 : i32
    return %arg0, %arg1, %arg2, %c0_i32 : i32, i32, i32, i32
  }
}

module attributes {stable_mosaic.version = 11 : i64} {
  func.func @_matmul_add_ln_kernel(%arg0: i32, %arg1: i32, %arg2: memref<16x32xf32, #tpu.memory_space<vmem>>, %arg3: memref<32x32xf32, #tpu.memory_space<vmem>>, %arg4: memref<1x32xf32, #tpu.memory_space<vmem>>, %arg5: memref<16x32xf32, #tpu.memory_space<vmem>>, %arg6: memref<1x32xf32, #tpu.memory_space<vmem>>, %arg7: memref<1x32xf32, #tpu.memory_space<vmem>>, %arg8: memref<16x32xf32, #tpu.memory_space<vmem>>, %arg9: memref<16x32xf32, #tpu.memory_space<vmem>>) attributes {dimension_semantics = [#tpu.dimension_semantics<parallel>, #tpu.dimension_semantics<arbitrary>], iteration_bounds = array<i64: 1, 1>, scalar_prefetch = 0 : i64, scratch_operands = 1 : i64, tpu.core_type = #tpu.core_type<tc>, window_params = [{transform_indices = @transform_0, window_bounds = array<i64: 16, 32>}, {transform_indices = @transform_1, window_bounds = array<i64: 32, 32>}, {pipeline_mode = #tpu.pipeline_mode<synchronous>, transform_indices = @transform_2, window_bounds = array<i64: 1, 32>}, {pipeline_mode = #tpu.pipeline_mode<synchronous>, transform_indices = @transform_3, window_bounds = array<i64: 16, 32>}, {pipeline_mode = #tpu.pipeline_mode<synchronous>, transform_indices = @transform_4, window_bounds = array<i64: 1, 32>}, {pipeline_mode = #tpu.pipeline_mode<synchronous>, transform_indices = @transform_5, window_bounds = array<i64: 1, 32>}, {transform_indices = @transform_6, window_bounds = array<i64: 16, 32>}]} {
    %c0_i32 = arith.constant 0 : i32
    %0 = arith.cmpi eq, %arg1, %c0_i32 : i32
    %1 = arith.extui %0 : i1 to i32
    %c0_i32_0 = arith.constant 0 : i32
    %2 = arith.cmpi ne, %1, %c0_i32_0 : i32
    scf.if %2 {
      %cst_10 = arith.constant 0.000000e+00 : f32
      %12 = vector.broadcast %cst_10 : f32 to vector<16x32xf32>
      %c0_11 = arith.constant 0 : index
      %c0_12 = arith.constant 0 : index
      %13 = vector.load %arg9[%c0_11, %c0_12] : memref<16x32xf32, #tpu.memory_space<vmem>>, vector<16x32xf32>
      tpu.vector_store %arg9[%c0_11, %c0_12], %12 {strides = array<i32>} : memref<16x32xf32, #tpu.memory_space<vmem>>, vector<16x32xf32>,
    } else {
    }
    %c0 = arith.constant 0 : index
    %c0_1 = arith.constant 0 : index
    %3 = vector.load %arg9[%c0, %c0_1] : memref<16x32xf32, #tpu.memory_space<vmem>>, vector<16x32xf32>
    %c0_2 = arith.constant 0 : index
    %c0_3 = arith.constant 0 : index
    %4 = vector.load %arg2[%c0_2, %c0_3] : memref<16x32xf32, #tpu.memory_space<vmem>>, vector<16x32xf32>
    %c0_4 = arith.constant 0 : index
    %c0_5 = arith.constant 0 : index
    %5 = vector.load %arg3[%c0_4, %c0_5] : memref<32x32xf32, #tpu.memory_space<vmem>>, vector<32x32xf32>
    %cst = arith.constant dense<0.000000e+00> : vector<16x32xf32>
    %6 = tpu.matmul %4, %5, %cst {dimension_numbers = #tpu.dot_dimension_numbers<[1], [0], [0], [1], [0, 0, 1, 1], [], []>} : vector<16x32xf32>, vector<32x32xf32>, vector<16x32xf32> -> vector<16x32xf32>
    %7 = arith.addf %3, %6 : vector<16x32xf32>
    %c0_6 = arith.constant 0 : index
    %c0_7 = arith.constant 0 : index
    %8 = vector.load %arg9[%c0_6, %c0_7] : memref<16x32xf32, #tpu.memory_space<vmem>>, vector<16x32xf32>
    tpu.vector_store %arg9[%c0_6, %c0_7], %7 {strides = array<i32>} : memref<16x32xf32, #tpu.memory_space<vmem>>, vector<16x32xf32>,
    %c0_i32_8 = arith.constant 0 : i32
    %9 = arith.cmpi eq, %arg1, %c0_i32_8 : i32
    %10 = arith.extui %9 : i1 to i32
    %c0_i32_9 = arith.constant 0 : i32
    %11 = arith.cmpi ne, %10, %c0_i32_9 : i32
    scf.if %11 {
      %c0_10 = arith.constant 0 : index
      %c0_11 = arith.constant 0 : index
      %12 = vector.load %arg9[%c0_10, %c0_11] : memref<16x32xf32, #tpu.memory_space<vmem>>, vector<16x32xf32>
      %c0_12 = arith.constant 0 : index
      %c0_13 = arith.constant 0 : index
      %13 = vector.load %arg4[%c0_12, %c0_13] : memref<1x32xf32, #tpu.memory_space<vmem>>, vector<1x32xf32>
      %14 = vector.broadcast %13 : vector<1x32xf32> to vector<16x32xf32>
      %15 = arith.addf %12, %14 : vector<16x32xf32>
      %c0_14 = arith.constant 0 : index
      %c0_15 = arith.constant 0 : index
      %16 = vector.load %arg5[%c0_14, %c0_15] : memref<16x32xf32, #tpu.memory_space<vmem>>, vector<16x32xf32>
      %17 = arith.addf %15, %16 : vector<16x32xf32>
      %cst_16 = arith.constant dense<0.000000e+00> : vector<16xf32>
      %18 = vector.multi_reduction <add>, %17, %cst_16 [1] : vector<16x32xf32> to vector<16xf32>
      %19 = vector.shape_cast %18 : vector<16xf32> to vector<16x1xf32>
      %cst_17 = arith.constant 3.200000e+01 : f32
      %20 = vector.broadcast %cst_17 : f32 to vector<16x1xf32>
      %21 = arith.divf %19, %20 : vector<16x1xf32>
      %22 = vector.broadcast %21 : vector<16x1xf32> to vector<16x32xf32>
      %23 = arith.subf %17, %22 : vector<16x32xf32>
      %24 = arith.mulf %23, %23 : vector<16x32xf32>
      %cst_18 = arith.constant dense<0.000000e+00> : vector<16xf32>
      %25 = vector.multi_reduction <add>, %24, %cst_18 [1] : vector<16x32xf32> to vector<16xf32>
      %26 = vector.shape_cast %25 : vector<16xf32> to vector<16x1xf32>
      %cst_19 = arith.constant 3.200000e+01 : f32
      %27 = vector.broadcast %cst_19 : f32 to vector<16x1xf32>
      %28 = arith.divf %26, %27 : vector<16x1xf32>
      %cst_20 = arith.constant 9.99999974E-6 : f32
      %29 = vector.broadcast %cst_20 : f32 to vector<16x1xf32>
      %30 = arith.addf %28, %29 : vector<16x1xf32>
      %31 = math.rsqrt %30 : vector<16x1xf32>
      %32 = vector.broadcast %31 : vector<16x1xf32> to vector<16x32xf32>
      %33 = arith.mulf %23, %32 : vector<16x32xf32>
      %c0_21 = arith.constant 0 : index
      %c0_22 = arith.constant 0 : index
      %34 = vector.load %arg6[%c0_21, %c0_22] : memref<1x32xf32, #tpu.memory_space<vmem>>, vector<1x32xf32>
      %35 = vector.broadcast %34 : vector<1x32xf32> to vector<16x32xf32>
      %36 = arith.mulf %33, %35 : vector<16x32xf32>
      %c0_23 = arith.constant 0 : index
      %c0_24 = arith.constant 0 : index
      %37 = vector.load %arg7[%c0_23, %c0_24] : memref<1x32xf32, #tpu.memory_space<vmem>>, vector<1x32xf32>
      %38 = vector.broadcast %37 : vector<1x32xf32> to vector<16x32xf32>
      %39 = arith.addf %36, %38 : vector<16x32xf32>
      %c0_25 = arith.constant 0 : index
      %c0_26 = arith.constant 0 : index
      %40 = vector.load %arg8[%c0_25, %c0_26] : memref<16x32xf32, #tpu.memory_space<vmem>>, vector<16x32xf32>
      tpu.vector_store %arg8[%c0_25, %c0_26], %39 {strides = array<i32>} : memref<16x32xf32, #tpu.memory_space<vmem>>, vector<16x32xf32>,
    } else {
    }
    return
  }
  func.func @transform_0(%arg0: i32, %arg1: i32) -> (i32, i32) {
    %c0_i32 = arith.constant 0 : i32
    return %arg0, %arg1 : i32, i32
  }
  func.func @transform_1(%arg0: i32, %arg1: i32) -> (i32, i32) {
    %c0_i32 = arith.constant 0 : i32
    %c0_i32_0 = arith.constant 0 : i32
    return %arg1, %c0_i32 : i32, i32
  }
  func.func @transform_2(%arg0: i32, %arg1: i32) -> (i32, i32) {
    %c0_i32 = arith.constant 0 : i32
    %c0_i32_0 = arith.constant 0 : i32
    %c0_i32_1 = arith.constant 0 : i32
    return %c0_i32, %c0_i32_0 : i32, i32
  }
  func.func @transform_3(%arg0: i32, %arg1: i32) -> (i32, i32) {
    %c0_i32 = arith.constant 0 : i32
    %c0_i32_0 = arith.constant 0 : i32
    return %arg0, %c0_i32 : i32, i32
  }
  func.func @transform_4(%arg0: i32, %arg1: i32) -> (i32, i32) {
    %c0_i32 = arith.constant 0 : i32
    %c0_i32_0 = arith.constant 0 : i32
    %c0_i32_1 = arith.constant 0 : i32
    return %c0_i32, %c0_i32_0 : i32, i32
  }
  func.func @transform_5(%arg0: i32, %arg1: i32) -> (i32, i32) {
    %c0_i32 = arith.constant 0 : i32
    %c0_i32_0 = arith.constant 0 : i32
    %c0_i32_1 = arith.constant 0 : i32
    return %c0_i32, %c0_i32_0 : i32, i32
  }
  func.func @transform_6(%arg0: i32, %arg1: i32) -> (i32, i32) {
    %c0_i32 = arith.constant 0 : i32
    %c0_i32_0 = arith.constant 0 : i32
    return %arg0, %c0_i32 : i32, i32
  }
}

module attributes {stable_mosaic.version = 11 : i64} {
  func.func @_matmul_kernel(%arg0: i32, %arg1: i32, %arg2: i32, %arg3: memref<16x32xf32, #tpu.memory_space<vmem>>, %arg4: memref<32x64xf32, #tpu.memory_space<vmem>>, %arg5: memref<1x64xf32, #tpu.memory_space<vmem>>, %arg6: memref<16x64xf32, #tpu.memory_space<vmem>>, %arg7: memref<16x64xf32, #tpu.memory_space<vmem>>) attributes {dimension_semantics = [#tpu.dimension_semantics<parallel>, #tpu.dimension_semantics<parallel>, #tpu.dimension_semantics<arbitrary>], iteration_bounds = array<i64: 1, 1, 1>, scalar_prefetch = 0 : i64, scratch_operands = 1 : i64, tpu.core_type = #tpu.core_type<tc>, window_params = [{transform_indices = @transform_0, window_bounds = array<i64: 16, 32>}, {transform_indices = @transform_1, window_bounds = array<i64: 32, 64>}, {transform_indices = @transform_2, window_bounds = array<i64: 1, 64>}, {transform_indices = @transform_3, window_bounds = array<i64: 16, 64>}]} {
    %c0_i32 = arith.constant 0 : i32
    %0 = arith.cmpi eq, %arg2, %c0_i32 : i32
    %1 = arith.extui %0 : i1 to i32
    %c0_i32_0 = arith.constant 0 : i32
    %2 = arith.cmpi ne, %1, %c0_i32_0 : i32
    scf.if %2 {
      %cst_10 = arith.constant 0.000000e+00 : f32
      %12 = vector.broadcast %cst_10 : f32 to vector<16x64xf32>
      %c0_11 = arith.constant 0 : index
      %c0_12 = arith.constant 0 : index
      %13 = vector.load %arg7[%c0_11, %c0_12] : memref<16x64xf32, #tpu.memory_space<vmem>>, vector<16x64xf32>
      tpu.vector_store %arg7[%c0_11, %c0_12], %12 {strides = array<i32>} : memref<16x64xf32, #tpu.memory_space<vmem>>, vector<16x64xf32>,
    } else {
    }
    %c0 = arith.constant 0 : index
    %c0_1 = arith.constant 0 : index
    %3 = vector.load %arg7[%c0, %c0_1] : memref<16x64xf32, #tpu.memory_space<vmem>>, vector<16x64xf32>
    %c0_2 = arith.constant 0 : index
    %c0_3 = arith.constant 0 : index
    %4 = vector.load %arg3[%c0_2, %c0_3] : memref<16x32xf32, #tpu.memory_space<vmem>>, vector<16x32xf32>
    %c0_4 = arith.constant 0 : index
    %c0_5 = arith.constant 0 : index
    %5 = vector.load %arg4[%c0_4, %c0_5] : memref<32x64xf32, #tpu.memory_space<vmem>>, vector<32x64xf32>
    %cst = arith.constant dense<0.000000e+00> : vector<16x64xf32>
    %6 = tpu.matmul %4, %5, %cst {dimension_numbers = #tpu.dot_dimension_numbers<[1], [0], [0], [1], [0, 0, 1, 1], [], []>} : vector<16x32xf32>, vector<32x64xf32>, vector<16x64xf32> -> vector<16x64xf32>
    %7 = arith.addf %3, %6 : vector<16x64xf32>
    %c0_6 = arith.constant 0 : index
    %c0_7 = arith.constant 0 : index
    %8 = vector.load %arg7[%c0_6, %c0_7] : memref<16x64xf32, #tpu.memory_space<vmem>>, vector<16x64xf32>
    tpu.vector_store %arg7[%c0_6, %c0_7], %7 {strides = array<i32>} : memref<16x64xf32, #tpu.memory_space<vmem>>, vector<16x64xf32>,
    %c0_i32_8 = arith.constant 0 : i32
    %9 = arith.cmpi eq, %arg2, %c0_i32_8 : i32
    %10 = arith.extui %9 : i1 to i32
    %c0_i32_9 = arith.constant 0 : i32
    %11 = arith.cmpi ne, %10, %c0_i32_9 : i32
    scf.if %11 {
      %c0_10 = arith.constant 0 : index
      %c0_11 = arith.constant 0 : index
      %12 = vector.load %arg7[%c0_10, %c0_11] : memref<16x64xf32, #tpu.memory_space<vmem>>, vector<16x64xf32>
      %c0_12 = arith.constant 0 : index
      %c0_13 = arith.constant 0 : index
      %13 = vector.load %arg5[%c0_12, %c0_13] : memref<1x64xf32, #tpu.memory_space<vmem>>, vector<1x64xf32>
      %14 = vector.broadcast %13 : vector<1x64xf32> to vector<16x64xf32>
      %15 = arith.addf %12, %14 : vector<16x64xf32>
      %cst_14 = arith.constant 0.000000e+00 : f32
      %16 = vector.broadcast %cst_14 : f32 to vector<16x64xf32>
      %17 = arith.maximumf %15, %16 : vector<16x64xf32>
      %c0_15 = arith.constant 0 : index
      %c0_16 = arith.constant 0 : index
      %18 = vector.load %arg6[%c0_15, %c0_16] : memref<16x64xf32, #tpu.memory_space<vmem>>, vector<16x64xf32>
      tpu.vector_store %arg6[%c0_15, %c0_16], %17 {strides = array<i32>} : memref<16x64xf32, #tpu.memory_space<vmem>>, vector<16x64xf32>,
    } else {
    }
    return
  }
  func.func @transform_0(%arg0: i32, %arg1: i32, %arg2: i32) -> (i32, i32) {
    %c0_i32 = arith.constant 0 : i32
    return %arg0, %arg2 : i32, i32
  }
  func.func @transform_1(%arg0: i32, %arg1: i32, %arg2: i32) -> (i32, i32) {
    %c0_i32 = arith.constant 0 : i32
    return %arg2, %arg1 : i32, i32
  }
  func.func @transform_2(%arg0: i32, %arg1: i32, %arg2: i32) -> (i32, i32) {
    %c0_i32 = arith.constant 0 : i32
    %c0_i32_0 = arith.constant 0 : i32
    return %c0_i32, %arg1 : i32, i32
  }
  func.func @transform_3(%arg0: i32, %arg1: i32, %arg2: i32) -> (i32, i32) {
    %c0_i32 = arith.constant 0 : i32
    return %arg0, %arg1 : i32, i32
  }
}

module attributes {stable_mosaic.version = 11 : i64} {
  func.func @_matmul_add_ln_kernel(%arg0: i32, %arg1: i32, %arg2: memref<16x64xf32, #tpu.memory_space<vmem>>, %arg3: memref<64x32xf32, #tpu.memory_space<vmem>>, %arg4: memref<1x32xf32, #tpu.memory_space<vmem>>, %arg5: memref<16x32xf32, #tpu.memory_space<vmem>>, %arg6: memref<1x32xf32, #tpu.memory_space<vmem>>, %arg7: memref<1x32xf32, #tpu.memory_space<vmem>>, %arg8: memref<16x32xf32, #tpu.memory_space<vmem>>, %arg9: memref<16x32xf32, #tpu.memory_space<vmem>>) attributes {dimension_semantics = [#tpu.dimension_semantics<parallel>, #tpu.dimension_semantics<arbitrary>], iteration_bounds = array<i64: 1, 1>, scalar_prefetch = 0 : i64, scratch_operands = 1 : i64, tpu.core_type = #tpu.core_type<tc>, window_params = [{transform_indices = @transform_0, window_bounds = array<i64: 16, 64>}, {transform_indices = @transform_1, window_bounds = array<i64: 64, 32>}, {pipeline_mode = #tpu.pipeline_mode<synchronous>, transform_indices = @transform_2, window_bounds = array<i64: 1, 32>}, {pipeline_mode = #tpu.pipeline_mode<synchronous>, transform_indices = @transform_3, window_bounds = array<i64: 16, 32>}, {pipeline_mode = #tpu.pipeline_mode<synchronous>, transform_indices = @transform_4, window_bounds = array<i64: 1, 32>}, {pipeline_mode = #tpu.pipeline_mode<synchronous>, transform_indices = @transform_5, window_bounds = array<i64: 1, 32>}, {transform_indices = @transform_6, window_bounds = array<i64: 16, 32>}]} {
    %c0_i32 = arith.constant 0 : i32
    %0 = arith.cmpi eq, %arg1, %c0_i32 : i32
    %1 = arith.extui %0 : i1 to i32
    %c0_i32_0 = arith.constant 0 : i32
    %2 = arith.cmpi ne, %1, %c0_i32_0 : i32
    scf.if %2 {
      %cst_10 = arith.constant 0.000000e+00 : f32
      %12 = vector.broadcast %cst_10 : f32 to vector<16x32xf32>
      %c0_11 = arith.constant 0 : index
      %c0_12 = arith.constant 0 : index
      %13 = vector.load %arg9[%c0_11, %c0_12] : memref<16x32xf32, #tpu.memory_space<vmem>>, vector<16x32xf32>
      tpu.vector_store %arg9[%c0_11, %c0_12], %12 {strides = array<i32>} : memref<16x32xf32, #tpu.memory_space<vmem>>, vector<16x32xf32>,
    } else {
    }
    %c0 = arith.constant 0 : index
    %c0_1 = arith.constant 0 : index
    %3 = vector.load %arg9[%c0, %c0_1] : memref<16x32xf32, #tpu.memory_space<vmem>>, vector<16x32xf32>
    %c0_2 = arith.constant 0 : index
    %c0_3 = arith.constant 0 : index
    %4 = vector.load %arg2[%c0_2, %c0_3] : memref<16x64xf32, #tpu.memory_space<vmem>>, vector<16x64xf32>
    %c0_4 = arith.constant 0 : index
    %c0_5 = arith.constant 0 : index
    %5 = vector.load %arg3[%c0_4, %c0_5] : memref<64x32xf32, #tpu.memory_space<vmem>>, vector<64x32xf32>
    %cst = arith.constant dense<0.000000e+00> : vector<16x32xf32>
    %6 = tpu.matmul %4, %5, %cst {dimension_numbers = #tpu.dot_dimension_numbers<[1], [0], [0], [1], [0, 0, 1, 1], [], []>} : vector<16x64xf32>, vector<64x32xf32>, vector<16x32xf32> -> vector<16x32xf32>
    %7 = arith.addf %3, %6 : vector<16x32xf32>
    %c0_6 = arith.constant 0 : index
    %c0_7 = arith.constant 0 : index
    %8 = vector.load %arg9[%c0_6, %c0_7] : memref<16x32xf32, #tpu.memory_space<vmem>>, vector<16x32xf32>
    tpu.vector_store %arg9[%c0_6, %c0_7], %7 {strides = array<i32>} : memref<16x32xf32, #tpu.memory_space<vmem>>, vector<16x32xf32>,
    %c0_i32_8 = arith.constant 0 : i32
    %9 = arith.cmpi eq, %arg1, %c0_i32_8 : i32
    %10 = arith.extui %9 : i1 to i32
    %c0_i32_9 = arith.constant 0 : i32
    %11 = arith.cmpi ne, %10, %c0_i32_9 : i32
    scf.if %11 {
      %c0_10 = arith.constant 0 : index
      %c0_11 = arith.constant 0 : index
      %12 = vector.load %arg9[%c0_10, %c0_11] : memref<16x32xf32, #tpu.memory_space<vmem>>, vector<16x32xf32>
      %c0_12 = arith.constant 0 : index
      %c0_13 = arith.constant 0 : index
      %13 = vector.load %arg4[%c0_12, %c0_13] : memref<1x32xf32, #tpu.memory_space<vmem>>, vector<1x32xf32>
      %14 = vector.broadcast %13 : vector<1x32xf32> to vector<16x32xf32>
      %15 = arith.addf %12, %14 : vector<16x32xf32>
      %c0_14 = arith.constant 0 : index
      %c0_15 = arith.constant 0 : index
      %16 = vector.load %arg5[%c0_14, %c0_15] : memref<16x32xf32, #tpu.memory_space<vmem>>, vector<16x32xf32>
      %17 = arith.addf %15, %16 : vector<16x32xf32>
      %cst_16 = arith.constant dense<0.000000e+00> : vector<16xf32>
      %18 = vector.multi_reduction <add>, %17, %cst_16 [1] : vector<16x32xf32> to vector<16xf32>
      %19 = vector.shape_cast %18 : vector<16xf32> to vector<16x1xf32>
      %cst_17 = arith.constant 3.200000e+01 : f32
      %20 = vector.broadcast %cst_17 : f32 to vector<16x1xf32>
      %21 = arith.divf %19, %20 : vector<16x1xf32>
      %22 = vector.broadcast %21 : vector<16x1xf32> to vector<16x32xf32>
      %23 = arith.subf %17, %22 : vector<16x32xf32>
      %24 = arith.mulf %23, %23 : vector<16x32xf32>
      %cst_18 = arith.constant dense<0.000000e+00> : vector<16xf32>
      %25 = vector.multi_reduction <add>, %24, %cst_18 [1] : vector<16x32xf32> to vector<16xf32>
      %26 = vector.shape_cast %25 : vector<16xf32> to vector<16x1xf32>
      %cst_19 = arith.constant 3.200000e+01 : f32
      %27 = vector.broadcast %cst_19 : f32 to vector<16x1xf32>
      %28 = arith.divf %26, %27 : vector<16x1xf32>
      %cst_20 = arith.constant 9.99999974E-6 : f32
      %29 = vector.broadcast %cst_20 : f32 to vector<16x1xf32>
      %30 = arith.addf %28, %29 : vector<16x1xf32>
      %31 = math.rsqrt %30 : vector<16x1xf32>
      %32 = vector.broadcast %31 : vector<16x1xf32> to vector<16x32xf32>
      %33 = arith.mulf %23, %32 : vector<16x32xf32>
      %c0_21 = arith.constant 0 : index
      %c0_22 = arith.constant 0 : index
      %34 = vector.load %arg6[%c0_21, %c0_22] : memref<1x32xf32, #tpu.memory_space<vmem>>, vector<1x32xf32>
      %35 = vector.broadcast %34 : vector<1x32xf32> to vector<16x32xf32>
      %36 = arith.mulf %33, %35 : vector<16x32xf32>
      %c0_23 = arith.constant 0 : index
      %c0_24 = arith.constant 0 : index
      %37 = vector.load %arg7[%c0_23, %c0_24] : memref<1x32xf32, #tpu.memory_space<vmem>>, vector<1x32xf32>
      %38 = vector.broadcast %37 : vector<1x32xf32> to vector<16x32xf32>
      %39 = arith.addf %36, %38 : vector<16x32xf32>
      %c0_25 = arith.constant 0 : index
      %c0_26 = arith.constant 0 : index
      %40 = vector.load %arg8[%c0_25, %c0_26] : memref<16x32xf32, #tpu.memory_space<vmem>>, vector<16x32xf32>
      tpu.vector_store %arg8[%c0_25, %c0_26], %39 {strides = array<i32>} : memref<16x32xf32, #tpu.memory_space<vmem>>, vector<16x32xf32>,
    } else {
    }
    return
  }
  func.func @transform_0(%arg0: i32, %arg1: i32) -> (i32, i32) {
    %c0_i32 = arith.constant 0 : i32
    return %arg0, %arg1 : i32, i32
  }
  func.func @transform_1(%arg0: i32, %arg1: i32) -> (i32, i32) {
    %c0_i32 = arith.constant 0 : i32
    %c0_i32_0 = arith.constant 0 : i32
    return %arg1, %c0_i32 : i32, i32
  }
  func.func @transform_2(%arg0: i32, %arg1: i32) -> (i32, i32) {
    %c0_i32 = arith.constant 0 : i32
    %c0_i32_0 = arith.constant 0 : i32
    %c0_i32_1 = arith.constant 0 : i32
    return %c0_i32, %c0_i32_0 : i32, i32
  }
  func.func @transform_3(%arg0: i32, %arg1: i32) -> (i32, i32) {
    %c0_i32 = arith.constant 0 : i32
    %c0_i32_0 = arith.constant 0 : i32
    return %arg0, %c0_i32 : i32, i32
  }
  func.func @transform_4(%arg0: i32, %arg1: i32) -> (i32, i32) {
    %c0_i32 = arith.constant 0 : i32
    %c0_i32_0 = arith.constant 0 : i32
    %c0_i32_1 = arith.constant 0 : i32
    return %c0_i32, %c0_i32_0 : i32, i32
  }
  func.func @transform_5(%arg0: i32, %arg1: i32) -> (i32, i32) {
    %c0_i32 = arith.constant 0 : i32
    %c0_i32_0 = arith.constant 0 : i32
    %c0_i32_1 = arith.constant 0 : i32
    return %c0_i32, %c0_i32_0 : i32, i32
  }
  func.func @transform_6(%arg0: i32, %arg1: i32) -> (i32, i32) {
    %c0_i32 = arith.constant 0 : i32
    %c0_i32_0 = arith.constant 0 : i32
    return %arg0, %c0_i32 : i32, i32
  }
}

</mosaic_0001>

<llo_original>
// kernel: transformer_block_forward.5
$region0: #{transformer_block_forward.5}
  #allocation0 [shape = 'u32[]', space=smem, size = 0x4, offset = 0x4, fixed_abs, tag = 'smem constant byte address 0x4 - core index']
  #allocation1 [shape = 'u32[144,128]{1,0:T(1,128)}', space=vmem, size = 0x12000, scoped, tag = 'internal scratch']
  #allocation2 [shape = 'f32[16,96]{1,0:T(8,128)}', space=vmem, size = 0x2000, scoped, tag = 'scratch operand']
  %s0 = inlined_call_operand.vmem [shape: f32[16,32], index: 0, kind: input, shape index: {}]
  %s1 = inlined_call_operand.hbm [shape: f32[32,96], index: 1, kind: input, shape index: {}]
  %s2 = inlined_call_operand.vmem [shape: f32[1,96], index: 2, kind: input, shape index: {}]
  %s3 = inlined_call_operand.vmem [shape: f32[16,96], index: 3, kind: output, shape index: {}]
  %s4 = sld [smem:[#allocation0]]
  $region34: #{transformer_block_forward.5} parent=0
    _
  %s6 = ssub.s32 1, %s4
  %s7 = scalar_select 0, %s6, %s4
  $region1: #{transformer_block_forward.5} parent=0
    #allocation3 [shape = 'u8[16384]{0}', space=vmem, size = 0x4000, scoped, tag = 'input window, operand 1, single buffered']
    #allocation4 [shape = 's32[1]{0}', space=sflag, size = 0x4, scoped, tag = 'scoped memory for transformer_block_forward.5']
    %8 = vsyncpa [#allocation4], 0
    // Predicated region
    $region2: #{transformer_block_forward.5} parent=1 // pred_check
      _
    $region3: #{transformer_block_forward.5} parent=1 // pred_check_branch
      %10 = sbr.rel (0) target = $region5
    $region4: #{transformer_block_forward.5} parent=1 // pred_region
      _
    $region5: #{transformer_block_forward.5} parent=1 // pred_fallthru
      _
    // Predicated region
    $region6: #{transformer_block_forward.5} parent=1 // pred_check
      _
    $region7: #{transformer_block_forward.5} parent=1 // pred_check_branch
      %12 = sbr.rel (0) target = $region9
    $region8: #{transformer_block_forward.5} parent=1 // pred_region
      %s14 = ssub.s32 512, 512
      %15 = vsyncadd [#allocation4], %s14
      %s16 = sshll.u32 [#allocation3], 4
      %s17 = int_to_ptr.vmem [resolvable:$true] %s16
      %22 = dma.hbm_to_vmem [thread:$0]  %s1, 512, %s17, [#allocation4], 128, 128, 8
    $region9: #{transformer_block_forward.5} parent=1 // pred_fallthru
      _
    // Predicated region
    $region10: #{transformer_block_forward.5} parent=1 // pred_check
      _
    $region11: #{transformer_block_forward.5} parent=1 // pred_check_branch
      %24 = sbr.rel (0) target = $region13
    $region12: #{transformer_block_forward.5} parent=1 // pred_region
      _
    $region13: #{transformer_block_forward.5} parent=1 // pred_fallthru
      _
    // Predicated region
    $region14: #{transformer_block_forward.5} parent=1 // pred_check
      _
    $region15: #{transformer_block_forward.5} parent=1 // pred_check_branch
      %26 = sbr.rel (0) target = $region17
    $region16: #{transformer_block_forward.5} parent=1 // pred_region
      %27 = dma.done [#allocation4], 512
    $region17: #{transformer_block_forward.5} parent=1 // pred_fallthru
      _
    %p28 = scmp.eq.s32.totalorder 0, 0
    // Predicated region
    $region18: #{transformer_block_forward.5} parent=1 // pred_check
      %p29 = pneg %p28
    $region19: #{transformer_block_forward.5} parent=1 // pred_check_branch
      %31 = sbr.rel (%p29) target = $region21
    $region20: #{transformer_block_forward.5} parent=1 // pred_region
      %vm32 = vcmask 785408
      %33 = vst.msk [vmem:[#allocation2] sm:$0xff] %vm32, 0.0
      %34 = vst.msk [vmem:[#allocation2 + $0x8] sm:$0xff] %vm32, 0.0
    $region21: #{transformer_block_forward.5} parent=1 // pred_fallthru
      _
    %v35 = vld [vmem:[#allocation2] sm:$0xff]
    %v36 = vld [vmem:[#allocation2 + $0x8] sm:$0xff]
    %v37 = vld [vmem:[%s0] sm:$0xff]
    %v38 = vld [vmem:[%s0 + $0x8] sm:$0xff]
    %v39 = vld [vmem:[#allocation3] sm:$0xff]
    %v40 = vld [vmem:[#allocation3 + $0x8] sm:$0xff]
    %v41 = vld [vmem:[#allocation3 + $0x10] sm:$0xff]
    %v42 = vld [vmem:[#allocation3 + $0x18] sm:$0xff]
    %vm43 = vcmask 261120
    %v45 = vsel %vm43, %v37, 0
    %v48 = vsel %vm43, %v38, 0
    %50 = vmatprep.subr.mxu0 0.0
    %51 = vmatpush1.msra.mxu0 0.0
    %52 = vmatprep.subr.mxu0 0.0
    %53 = vmatpush1.msra.mxu0 0.0
    %54 = vmatprep.subr.mxu0 0.0
    %55 = vmatpush1.msra.mxu0 0.0
    %56 = vmatprep.subr.mxu0 0.0
    %57 = vmatpush1.msra.mxu0 0.0
    %58 = vmatprep.subr.mxu0 0.0
    %59 = vmatpush1.msra.mxu0 0.0
    %60 = vmatprep.subr.mxu0 0.0
    %61 = vmatpush1.msra.mxu0 0.0
    %62 = vmatprep.subr.mxu0 0.0
    %63 = vmatpush1.msra.mxu0 0.0
    %64 = vmatprep.subr.mxu0 0.0
    %65 = vmatpush1.msra.mxu0 0.0
    %66 = vmatprep.subr.mxu0 0.0
    %67 = vmatpush1.msra.mxu0 0.0
    %68 = vmatprep.subr.mxu0 0.0
    %69 = vmatpush1.msra.mxu0 0.0
    %70 = vmatprep.subr.mxu0 0.0
    %71 = vmatpush1.msra.mxu0 0.0
    %72 = vmatprep.subr.mxu0 0.0
    %73 = vmatpush1.msra.mxu0 0.0
    %74 = vmatprep.subr.mxu0 0.0
    %75 = vmatpush1.msra.mxu0 %v42
    %76 = vmatprep.subr.mxu0 0.0
    %77 = vmatpush1.msra.mxu0 %v41
    %78 = vmatprep.subr.mxu0 0.0
    %79 = vmatpush1.msra.mxu0 %v40
    %80 = vmatprep.subr.mxu0 0.0
    %81 = vmatpush1.msra.mxu0 %v39
    %82 = vmatprep.subr.mxu0 0.0
    %83 = vmatpush2.msra.mxu0 0.0
    %84 = vmatprep.subr.mxu0 0.0
    %85 = vmatpush2.msra.mxu0 0.0
    %86 = vmatprep.subr.mxu0 0.0
    %87 = vmatpush2.msra.mxu0 0.0
    %88 = vmatprep.subr.mxu0 0.0
    %89 = vmatpush2.msra.mxu0 0.0
    %90 = vmatprep.subr.mxu0 0.0
    %91 = vmatpush2.msra.mxu0 0.0
    %92 = vmatprep.subr.mxu0 0.0
    %93 = vmatpush2.msra.mxu0 0.0
    %94 = vmatprep.subr.mxu0 0.0
    %95 = vmatpush2.msra.mxu0 0.0
    %96 = vmatprep.subr.mxu0 0.0
    %97 = vmatpush2.msra.mxu0 0.0
    %98 = vmatprep.subr.mxu0 0.0
    %99 = vmatpush2.msra.mxu0 0.0
    %100 = vmatprep.subr.mxu0 0.0
    %101 = vmatpush2.msra.mxu0 0.0
    %102 = vmatprep.subr.mxu0 0.0
    %103 = vmatpush2.msra.mxu0 0.0
    %104 = vmatprep.subr.mxu0 0.0
    %105 = vmatpush2.msra.mxu0 0.0
    %106 = vmatprep.subr.mxu0 0.0
    %107 = vmatpush2.msra.mxu0 0.0
    %108 = vmatprep.subr.mxu0 0.0
    %109 = vmatpush2.msra.mxu0 0.0
    %110 = vmatprep.subr.mxu0 0.0
    %111 = vmatpush2.msra.mxu0 0.0
    %112 = vmatprep.subr.mxu0 0.0
    %113 = vmatpush2.msra.mxu0 0.0
    %114 = vmatprep.mubr.f32.mxu0 0.0
    %115 = vmatmul.mubr.f32.gmra.mxu0 %v45
    %v116 = vpop.f32.mrf.mxu0
    %v117 = vadd.f32 0.0, %v116
    %v118 = vpop.f32.mrf.mxu0
    %119 = vmatprep.mubr.f32.mxu0 0.0
    %120 = vmatmul.mubr.f32.gmra.mxu0 %v48
    %v121 = vpop.f32.mrf.mxu0
    %v122 = vadd.f32 0.0, %v121
    %v123 = vpop.f32.mrf.mxu0
    %124 = vdwg.mxu0
    %v125 = vadd.f32 %v35, %v117
    %v126 = vadd.f32 %v36, %v122
    %vm127 = vcmask 785408
    %128 = vst.msk [vmem:[#allocation2] sm:$0xff] %vm127, %v125
    %129 = vst.msk [vmem:[#allocation2 + $0x8] sm:$0xff] %vm127, %v126
    // Predicated region
    $region22: #{transformer_block_forward.5} parent=1 // pred_check
      %p130 = pneg %p28
    $region23: #{transformer_block_forward.5} parent=1 // pred_check_branch
      %132 = sbr.rel (%p130) target = $region25
    $region24: #{transformer_block_forward.5} parent=1 // pred_region
      %v133 = vld [vmem:[#allocation2] sm:$0xff]
      %v134 = vld [vmem:[#allocation2 + $0x8] sm:$0xff]
      %v135 = vld [vmem:[%s2] sm:$0x1]
      %v137 = vlaneseq
      %v138 = vshrl.u32 %v137, 7
      %v139 = vsub.s32 0, %v138
      %v140 = vrot.slane %v135, %v139
      %v142 = vadd.f32 %v133, %v140
      %v143 = vadd.f32 %v134, %v140
      %144 = vst.msk [vmem:[%s3] sm:$0xff] %vm127, %v142
      %145 = vst.msk [vmem:[%s3 + $0x8] sm:$0xff] %vm127, %v143
    $region25: #{transformer_block_forward.5} parent=1 // pred_fallthru
      _
    // Predicated region
    $region26: #{transformer_block_forward.5} parent=1 // pred_check
      _
    $region27: #{transformer_block_forward.5} parent=1 // pred_check_branch
      %147 = sbr.rel (0) target = $region29
    $region28: #{transformer_block_forward.5} parent=1 // pred_region
      _
    $region29: #{transformer_block_forward.5} parent=1 // pred_fallthru
      _
    // Predicated region
    $region30: #{transformer_block_forward.5} parent=1 // pred_check
      _
    $region31: #{transformer_block_forward.5} parent=1 // pred_check_branch
      %149 = sbr.rel (0) target = $region33
    $region32: #{transformer_block_forward.5} parent=1 // pred_region
      _
    $region33: #{transformer_block_forward.5} parent=1 // pred_fallthru
      _
    %150 = vsyncpa [#allocation4], 1

// kernel: transformer_block_forward.6
$region0: #{transformer_block_forward.6}
  #allocation0 [shape = 'u32[]', space=smem, size = 0x4, offset = 0x4, fixed_abs, tag = 'smem constant byte address 0x4 - core index']
  #allocation1 [shape = 'u32[144,128]{1,0:T(1,128)}', space=vmem, size = 0x12000, scoped, tag = 'internal scratch']
  #allocation2 [shape = 'f32[8,1]{1,0:T(8,128)}', space=vmem, size = 0x1000, scoped, tag = 'scratch operand']
  #allocation3 [shape = 'f32[8,1]{1,0:T(8,128)}', space=vmem, size = 0x1000, scoped, tag = 'scratch operand']
  #allocation4 [shape = 'f32[8,8]{1,0:T(8,128)}', space=vmem, size = 0x1000, scoped, tag = 'scratch operand']
  %s0 = inlined_call_operand.vmem [shape: f32[2,12,8,8], index: 0, kind: input, shape index: {}, may-alias: {0,1,2}]
  %s1 = inlined_call_operand.vmem [shape: f32[2,12,8,8], index: 1, kind: input, shape index: {}, may-alias: {0,1,2}]
  %s2 = inlined_call_operand.vmem [shape: f32[2,12,8,8], index: 2, kind: input, shape index: {}, may-alias: {0,1,2}]
  %s3 = inlined_call_operand.vmem [shape: f32[2,4,8,8], index: 3, kind: output, shape index: {}]
  %s4 = sld [smem:[#allocation0]]
  $region53: #{transformer_block_forward.6} parent=0
    _
  %s6 = ssub.s32 1, %s4
  %s7 = scalar_select 0, %s6, %s4
  loop: start=0, step=1, limit=10
  $region2: #{transformer_block_forward.6} parent=0 // loop_pre_header
    _
  $region3: #{transformer_block_forward.6} parent=0 // loop_header
    %s9 = sphi 0, %s13
    %p10 = scmp.ge.s32.totalorder %s9, 10
    %s16 = sphi 0, %s42
    %s17 = sphi 0, %s38
    %s18 = sphi 0, %s34
    %s19 = sphi 0, %s30
    %s20 = sphi 0, %s16
    %s21 = sphi 0, %s17
    %s22 = sphi 0, %s18
    %s23 = sphi 0, %s19
    %s24 = sphi 0, %s20
    %s25 = sphi 0, %s21
    %s26 = sphi 0, %s22
    %s27 = sphi 0, %s23
    %s49 = sphi 0, %s51
    %s52 = sphi 0, %s49
    %s53 = sphi 0, %s52
    %s69 = sphi 0, %s53
    %s81 = sphi 0, %s83
    %s84 = sphi 0, %s81
    %s85 = sphi 0, %s84
    %s101 = sphi 0, %s85
    %s113 = sphi 0, %s115
    %s116 = sphi 0, %s113
    %s117 = sphi 0, %s116
    %s133 = sphi 0, %s117
    %s143 = sphi 0, %s145
    %s146 = sphi 0, %s143
    %s147 = sphi 0, %s146
    %s163 = sphi 0, %s147
  $region4: #{transformer_block_forward.6} parent=0 // loop_header_branch
    %12 = sbr.rel (%p10) target = $region8
  $region5: #{transformer_block_forward.6} parent=0 // loop_body
    %s14 = ssub.s32 %s9, 1
    %s15 = ssub.s32 %s9, 2
    %s28 = sadd.s32 1, %s19
    %p29 = scmp.ge.s32.totalorder %s28, 1
    %s30 = scalar_select %p29, 0, %s28
    %s31 = sadd.s32 1, %s18
    %s32 = scalar_select %p29, %s31, %s18
    %p33 = scmp.ge.s32.totalorder %s32, 1
    %s34 = scalar_select %p33, 0, %s32
    %s35 = sadd.s32 1, %s17
    %s36 = scalar_select %p33, %s35, %s17
    %p37 = scmp.ge.s32.totalorder %s36, 4
    %s38 = scalar_select %p37, 0, %s36
    %s39 = sadd.s32 1, %s16
    %s40 = scalar_select %p37, %s39, %s16
    %p41 = scmp.ge.s32.totalorder %s40, 2
    %s42 = scalar_select %p41, 0, %s40
    %s43 = ssub.s32 %s16, %s42
    %s44 = ssub.s32 %s17, %s38
    %s45 = sor.u32 %s43, %s44
    %s46 = ssub.s32 %s18, %s34
    %s47 = sor.u32 %s45, %s46
    %p48 = scmp.eq.s32.totalorder %s47, 0
    %s50 = sadd.s32 %s49, 1
    %s51 = scalar_select %p48, %s49, %s50
    %p54 = pneg %p48
    %p55 = scmp.eq.s32.totalorder %s9, 7
    %p56 = por %p54, %p55
    %p57 = scmp.ne.s32.totalorder %s49, %s52
    %p58 = scmp.eq.s32.totalorder %s9, 0
    %p59 = por %p57, %p58
    %p60 = scmp.ne.s32.totalorder %s49, %s52
    %p61 = scmp.eq.s32.totalorder %s14, 7
    %p62 = por %p60, %p61
    %p63 = scmp.ne.s32.totalorder %s52, %s53
    %p64 = scmp.eq.s32.totalorder %s14, 0
    %p65 = por %p63, %p64
    %p66 = scmp.ne.s32.totalorder %s52, %s53
    %p67 = scmp.eq.s32.totalorder %s15, 7
    %p68 = por %p66, %p67
    %p70 = scmp.ne.s32.totalorder %s53, %s69
    %p71 = scmp.eq.s32.totalorder %s15, 0
    %p72 = por %p70, %p71
    %s73 = sadd.s32 %s17, 4
    %s74 = sadd.s32 %s38, 4
    %s75 = ssub.s32 %s16, %s42
    %s76 = ssub.s32 %s73, %s74
    %s77 = sor.u32 %s75, %s76
    %s78 = ssub.s32 %s19, %s30
    %s79 = sor.u32 %s77, %s78
    %p80 = scmp.eq.s32.totalorder %s79, 0
    %s82 = sadd.s32 %s81, 1
    %s83 = scalar_select %p80, %s81, %s82
    %p86 = pneg %p80
    %p87 = scmp.eq.s32.totalorder %s9, 7
    %p88 = por %p86, %p87
    %p89 = scmp.ne.s32.totalorder %s81, %s84
    %p90 = scmp.eq.s32.totalorder %s9, 0
    %p91 = por %p89, %p90
    %p92 = scmp.ne.s32.totalorder %s81, %s84
    %p93 = scmp.eq.s32.totalorder %s14, 7
    %p94 = por %p92, %p93
    %p95 = scmp.ne.s32.totalorder %s84, %s85
    %p96 = scmp.eq.s32.totalorder %s14, 0
    %p97 = por %p95, %p96
    %p98 = scmp.ne.s32.totalorder %s84, %s85
    %p99 = scmp.eq.s32.totalorder %s15, 7
    %p100 = por %p98, %p99
    %p102 = scmp.ne.s32.totalorder %s85, %s101
    %p103 = scmp.eq.s32.totalorder %s15, 0
    %p104 = por %p102, %p103
    %s105 = sadd.s32 %s17, 8
    %s106 = sadd.s32 %s38, 8
    %s107 = ssub.s32 %s16, %s42
    %s108 = ssub.s32 %s105, %s106
    %s109 = sor.u32 %s107, %s108
    %s110 = ssub.s32 %s19, %s30
    %s111 = sor.u32 %s109, %s110
    %p112 = scmp.eq.s32.totalorder %s111, 0
    %s114 = sadd.s32 %s113, 1
    %s115 = scalar_select %p112, %s113, %s114
    %p118 = pneg %p112
    %p119 = scmp.eq.s32.totalorder %s9, 7
    %p120 = por %p118, %p119
    %p121 = scmp.ne.s32.totalorder %s113, %s116
    %p122 = scmp.eq.s32.totalorder %s9, 0
    %p123 = por %p121, %p122
    %p124 = scmp.ne.s32.totalorder %s113, %s116
    %p125 = scmp.eq.s32.totalorder %s14, 7
    %p126 = por %p124, %p125
    %p127 = scmp.ne.s32.totalorder %s116, %s117
    %p128 = scmp.eq.s32.totalorder %s14, 0
    %p129 = por %p127, %p128
    %p130 = scmp.ne.s32.totalorder %s116, %s117
    %p131 = scmp.eq.s32.totalorder %s15, 7
    %p132 = por %p130, %p131
    %p134 = scmp.ne.s32.totalorder %s117, %s133
    %p135 = scmp.eq.s32.totalorder %s15, 0
    %p136 = por %p134, %p135
    %s137 = ssub.s32 %s16, %s42
    %s138 = ssub.s32 %s17, %s38
    %s139 = sor.u32 %s137, %s138
    %s140 = ssub.s32 %s18, %s34
    %s141 = sor.u32 %s139, %s140
    %p142 = scmp.eq.s32.totalorder %s141, 0
    %s144 = sadd.s32 %s143, 1
    %s145 = scalar_select %p142, %s143, %s144
    %p148 = pneg %p142
    %p149 = scmp.eq.s32.totalorder %s9, 7
    %p150 = por %p148, %p149
    %p151 = scmp.ne.s32.totalorder %s143, %s146
    %p152 = scmp.eq.s32.totalorder %s9, 0
    %p153 = por %p151, %p152
    %p154 = scmp.ne.s32.totalorder %s143, %s146
    %p155 = scmp.eq.s32.totalorder %s14, 7
    %p156 = por %p154, %p155
    %p157 = scmp.ne.s32.totalorder %s146, %s147
    %p158 = scmp.eq.s32.totalorder %s14, 0
    %p159 = por %p157, %p158
    %p160 = scmp.ne.s32.totalorder %s146, %s147
    %p161 = scmp.eq.s32.totalorder %s15, 7
    %p162 = por %p160, %p161
    %p164 = scmp.ne.s32.totalorder %s147, %s163
    %p165 = scmp.eq.s32.totalorder %s15, 0
    %p166 = por %p164, %p165
    %p167 = scmp.le.s32.totalorder 1, %s9
    %p168 = scmp.lt.s32.totalorder %s9, 9
    %p169 = pnand %p167, %p168
    %p170 = pneg %p169
    // Predicated region
    $region9: #{transformer_block_forward.6} parent=5 // pred_check
      _
    $region10: #{transformer_block_forward.6} parent=5 // pred_check_branch
      %172 = sbr.rel (%p169) target = $region12
    $region11: #{transformer_block_forward.6} parent=5 // pred_region
      %s173 = ssub.s32 %s9, 1
    $region12: #{transformer_block_forward.6} parent=5 // pred_fallthru
      _
    %p174 = scmp.lt.s32.totalorder %s9, 8
    // Predicated region
    $region13: #{transformer_block_forward.6} parent=5 // pred_check
      %p175 = pneg %p174
    $region14: #{transformer_block_forward.6} parent=5 // pred_check_branch
      %177 = sbr.rel (%p175) target = $region16
    $region15: #{transformer_block_forward.6} parent=5 // pred_region
      // Predicated region
      $region17: #{transformer_block_forward.6} parent=15 // pred_check
        %p178 = pneg %p59
      $region18: #{transformer_block_forward.6} parent=15 // pred_check_branch
        %180 = sbr.rel (%p178) target = $region20
      $region19: #{transformer_block_forward.6} parent=15 // pred_region
        %p181 = scmp.lt.s32.totalorder %s16, 1
        %s182 = scalar_select %p181, %s16, 1
        %p183 = scmp.lt.s32.totalorder %s17, 11
        %s184 = scalar_select %p183, %s17, 11
        %p185 = scmp.lt.s32.totalorder %s18, 0
        %s186 = scalar_select %p185, %s18, 0
        %s187 = sadd.s32 %s186, %s184
        %s188 = smul.addr %s182, 12
        %s189 = sadd.s32 %s187, %s188
        %s190 = smul.addr %s189, 8
        %s191 = scalar_lea.vmem %s0, %s190
      $region20: #{transformer_block_forward.6} parent=15 // pred_fallthru
        _
      // Predicated region
      $region21: #{transformer_block_forward.6} parent=15 // pred_check
        %p192 = pneg %p91
      $region22: #{transformer_block_forward.6} parent=15 // pred_check_branch
        %194 = sbr.rel (%p192) target = $region24
      $region23: #{transformer_block_forward.6} parent=15 // pred_region
        %s195 = sadd.s32 %s17, 4
        %p196 = scmp.lt.s32.totalorder %s16, 1
        %s197 = scalar_select %p196, %s16, 1
        %p198 = scmp.lt.s32.totalorder %s195, 11
        %s199 = scalar_select %p198, %s195, 11
        %p200 = scmp.lt.s32.totalorder %s19, 0
        %s201 = scalar_select %p200, %s19, 0
        %s202 = sadd.s32 %s201, %s199
        %s203 = smul.addr %s197, 12
        %s204 = sadd.s32 %s202, %s203
        %s205 = smul.addr %s204, 8
        %s206 = scalar_lea.vmem %s1, %s205
        %s207 = sadd.s32 %s17, 4
      $region24: #{transformer_block_forward.6} parent=15 // pred_fallthru
        _
      // Predicated region
      $region25: #{transformer_block_forward.6} parent=15 // pred_check
        %p208 = pneg %p123
      $region26: #{transformer_block_forward.6} parent=15 // pred_check_branch
        %210 = sbr.rel (%p208) target = $region28
      $region27: #{transformer_block_forward.6} parent=15 // pred_region
        %s211 = sadd.s32 %s17, 8
        %p212 = scmp.lt.s32.totalorder %s16, 1
        %s213 = scalar_select %p212, %s16, 1
        %p214 = scmp.lt.s32.totalorder %s211, 11
        %s215 = scalar_select %p214, %s211, 11
        %p216 = scmp.lt.s32.totalorder %s19, 0
        %s217 = scalar_select %p216, %s19, 0
        %s218 = sadd.s32 %s217, %s215
        %s219 = smul.addr %s213, 12
        %s220 = sadd.s32 %s218, %s219
        %s221 = smul.addr %s220, 8
        %s222 = scalar_lea.vmem %s2, %s221
        %s223 = sadd.s32 %s17, 8
      $region28: #{transformer_block_forward.6} parent=15 // pred_fallthru
        _
    $region16: #{transformer_block_forward.6} parent=5 // pred_fallthru
      _
    %p224 = scmp.le.s32.totalorder 1, %s9
    %p225 = scmp.lt.s32.totalorder %s9, 9
    %p226 = pnand %p224, %p225
    %p227 = pneg %p226
    // Predicated region
    $region29: #{transformer_block_forward.6} parent=5 // pred_check
      _
    $region30: #{transformer_block_forward.6} parent=5 // pred_check_branch
      %229 = sbr.rel (%p226) target = $region32
    $region31: #{transformer_block_forward.6} parent=5 // pred_region
      %s230 = ssub.s32 %s9, 1
      %p231 = scmp.lt.s32.totalorder %s20, 1
      %s232 = scalar_select %p231, %s20, 1
      %p233 = scmp.lt.s32.totalorder %s21, 11
      %s234 = scalar_select %p233, %s21, 11
      %p235 = scmp.lt.s32.totalorder %s22, 0
      %s236 = scalar_select %p235, %s22, 0
      %s237 = sadd.s32 %s236, %s234
      %s238 = smul.addr %s232, 12
      %s239 = sadd.s32 %s237, %s238
      %s240 = smul.addr %s239, 8
      %s241 = scalar_lea.vmem %s0, %s240
      %p242 = pneg %p65
      %p243 = pneg %p62
      %s244 = sadd.s32 %s21, 4
      %p245 = scmp.lt.s32.totalorder %s20, 1
      %s246 = scalar_select %p245, %s20, 1
      %p247 = scmp.lt.s32.totalorder %s244, 11
      %s248 = scalar_select %p247, %s244, 11
      %p249 = scmp.lt.s32.totalorder %s23, 0
      %s250 = scalar_select %p249, %s23, 0
      %s251 = sadd.s32 %s250, %s248
      %s252 = smul.addr %s246, 12
      %s253 = sadd.s32 %s251, %s252
      %s254 = smul.addr %s253, 8
      %s255 = scalar_lea.vmem %s1, %s254
      %p256 = pneg %p97
      %p257 = pneg %p94
      %s258 = sadd.s32 %s21, 8
      %p259 = scmp.lt.s32.totalorder %s20, 1
      %s260 = scalar_select %p259, %s20, 1
      %p261 = scmp.lt.s32.totalorder %s258, 11
      %s262 = scalar_select %p261, %s258, 11
      %p263 = scmp.lt.s32.totalorder %s23, 0
      %s264 = scalar_select %p263, %s23, 0
      %s265 = sadd.s32 %s264, %s262
      %s266 = smul.addr %s260, 12
      %s267 = sadd.s32 %s265, %s266
      %s268 = smul.addr %s267, 8
      %s269 = scalar_lea.vmem %s2, %s268
      %p270 = pneg %p129
      %p271 = pneg %p126
      %p272 = pneg %p159
      %p273 = pneg %p156
      %p274 = scmp.lt.s32.totalorder %s20, 1
      %s275 = scalar_select %p274, %s20, 1
      %p276 = scmp.lt.s32.totalorder %s21, 3
      %s277 = scalar_select %p276, %s21, 3
      %p278 = scmp.lt.s32.totalorder %s22, 0
      %s279 = scalar_select %p278, %s22, 0
      %s280 = sadd.s32 %s279, %s277
      %s281 = smul.addr %s275, 4
      %s282 = sadd.s32 %s280, %s281
      %s283 = smul.addr %s282, 8
      %s284 = scalar_lea.vmem %s3, %s283
      %p285 = scmp.lt.s32.totalorder %s20, 1
      %s286 = scalar_select %p285, %s20, 1
      %p287 = scmp.lt.s32.totalorder %s21, 11
      %s288 = scalar_select %p287, %s21, 11
      %p289 = scmp.lt.s32.totalorder %s22, 0
      %s290 = scalar_select %p289, %s22, 0
      %s291 = sadd.s32 %s290, %s288
      %s292 = smul.addr %s286, 12
      %s293 = sadd.s32 %s291, %s292
      %s294 = smul.addr %s293, 8
      %s295 = scalar_lea.vmem %s0, %s294
      %s296 = sadd.s32 %s21, 4
      %p297 = scmp.lt.s32.totalorder %s20, 1
      %s298 = scalar_select %p297, %s20, 1
      %p299 = scmp.lt.s32.totalorder %s296, 11
      %s300 = scalar_select %p299, %s296, 11
      %p301 = scmp.lt.s32.totalorder %s23, 0
      %s302 = scalar_select %p301, %s23, 0
      %s303 = sadd.s32 %s302, %s300
      %s304 = smul.addr %s298, 12
      %s305 = sadd.s32 %s303, %s304
      %s306 = smul.addr %s305, 8
      %s307 = scalar_lea.vmem %s1, %s306
      %s308 = sadd.s32 %s21, 4
      %s309 = sadd.s32 %s21, 8
      %p310 = scmp.lt.s32.totalorder %s20, 1
      %s311 = scalar_select %p310, %s20, 1
      %p312 = scmp.lt.s32.totalorder %s309, 11
      %s313 = scalar_select %p312, %s309, 11
      %p314 = scmp.lt.s32.totalorder %s23, 0
      %s315 = scalar_select %p314, %s23, 0
      %s316 = sadd.s32 %s315, %s313
      %s317 = smul.addr %s311, 12
      %s318 = sadd.s32 %s316, %s317
      %s319 = smul.addr %s318, 8
      %s320 = scalar_lea.vmem %s2, %s319
      %s321 = sadd.s32 %s21, 8
      %p322 = scmp.lt.s32.totalorder %s20, 1
      %s323 = scalar_select %p322, %s20, 1
      %p324 = scmp.lt.s32.totalorder %s21, 3
      %s325 = scalar_select %p324, %s21, 3
      %p326 = scmp.lt.s32.totalorder %s22, 0
      %s327 = scalar_select %p326, %s22, 0
      %s328 = sadd.s32 %s327, %s325
      %s329 = smul.addr %s323, 4
      %s330 = sadd.s32 %s328, %s329
      %s331 = smul.addr %s330, 8
      %s332 = scalar_lea.vmem %s3, %s331
      %p333 = scmp.eq.s32.totalorder %s23, 0
      // Predicated region
      $region33: #{transformer_block_forward.6} parent=31 // pred_check
        %p334 = pneg %p333
      $region34: #{transformer_block_forward.6} parent=31 // pred_check_branch
        %336 = sbr.rel (%p334) target = $region36
      $region35: #{transformer_block_forward.6} parent=31 // pred_region
        %vm337 = vcmask 7168
        %338 = vst.msk [vmem:[#allocation2] sm:$0xff] %vm337, -inf
        %339 = vst.msk [vmem:[#allocation3] sm:$0xff] %vm337, 0.0
        %vm340 = vcmask 64512
        %341 = vst.msk [vmem:[#allocation4] sm:$0xff] %vm340, 0.0
      $region36: #{transformer_block_forward.6} parent=31 // pred_fallthru
        _
      %v342 = vld [vmem:[%s295] sm:$0xff]
      %v343 = vld [vmem:[%s307] sm:$0xff]
      %vm344 = vcmask 64512
      %v346 = vsel %vm344, %v342, 0
      %v349 = vsel %vm344, %v343, 0
      %351 = vmatprep.subr.mxu0 0.0
      %352 = vmatpush1.xpose.msra.mxu0 0.0
      %353 = vmatprep.subr.mxu0 0.0
      %354 = vmatpush1.xpose.msra.mxu0 0.0
      %355 = vmatprep.subr.mxu0 0.0
      %356 = vmatpush1.xpose.msra.mxu0 0.0
      %357 = vmatprep.subr.mxu0 0.0
      %358 = vmatpush1.xpose.msra.mxu0 0.0
      %359 = vmatprep.subr.mxu0 0.0
      %360 = vmatpush1.xpose.msra.mxu0 0.0
      %361 = vmatprep.subr.mxu0 0.0
      %362 = vmatpush1.xpose.msra.mxu0 0.0
      %363 = vmatprep.subr.mxu0 0.0
      %364 = vmatpush1.xpose.msra.mxu0 0.0
      %365 = vmatprep.subr.mxu0 0.0
      %366 = vmatpush1.xpose.msra.mxu0 0.0
      %367 = vmatprep.subr.mxu0 0.0
      %368 = vmatpush1.xpose.msra.mxu0 0.0
      %369 = vmatprep.subr.mxu0 0.0
      %370 = vmatpush1.xpose.msra.mxu0 0.0
      %371 = vmatprep.subr.mxu0 0.0
      %372 = vmatpush1.xpose.msra.mxu0 0.0
      %373 = vmatprep.subr.mxu0 0.0
      %374 = vmatpush1.xpose.msra.mxu0 0.0
      %375 = vmatprep.subr.mxu0 0.0
      %376 = vmatpush1.xpose.msra.mxu0 0.0
      %377 = vmatprep.subr.mxu0 0.0
      %378 = vmatpush1.xpose.msra.mxu0 0.0
      %379 = vmatprep.subr.mxu0 0.0
      %380 = vmatpush1.xpose.msra.mxu0 0.0
      %381 = vmatprep.subr.mxu0 0.0
      %382 = vmatpush1.xpose.msra.mxu0 %v349
      %383 = vmatprep.subr.mxu0 0.0
      %384 = vmatpush2.xpose.msra.mxu0 0.0
      %385 = vmatprep.subr.mxu0 0.0
      %386 = vmatpush2.xpose.msra.mxu0 0.0
      %387 = vmatprep.subr.mxu0 0.0
      %388 = vmatpush2.xpose.msra.mxu0 0.0
      %389 = vmatprep.subr.mxu0 0.0
      %390 = vmatpush2.xpose.msra.mxu0 0.0
      %391 = vmatprep.subr.mxu0 0.0
      %392 = vmatpush2.xpose.msra.mxu0 0.0
      %393 = vmatprep.subr.mxu0 0.0
      %394 = vmatpush2.xpose.msra.mxu0 0.0
      %395 = vmatprep.subr.mxu0 0.0
      %396 = vmatpush2.xpose.msra.mxu0 0.0
      %397 = vmatprep.subr.mxu0 0.0
      %398 = vmatpush2.xpose.msra.mxu0 0.0
      %399 = vmatprep.subr.mxu0 0.0
      %400 = vmatpush2.xpose.msra.mxu0 0.0
      %401 = vmatprep.subr.mxu0 0.0
      %402 = vmatpush2.xpose.msra.mxu0 0.0
      %403 = vmatprep.subr.mxu0 0.0
      %404 = vmatpush2.xpose.msra.mxu0 0.0
      %405 = vmatprep.subr.mxu0 0.0
      %406 = vmatpush2.xpose.msra.mxu0 0.0
      %407 = vmatprep.subr.mxu0 0.0
      %408 = vmatpush2.xpose.msra.mxu0 0.0
      %409 = vmatprep.subr.mxu0 0.0
      %410 = vmatpush2.xpose.msra.mxu0 0.0
      %411 = vmatprep.subr.mxu0 0.0
      %412 = vmatpush2.xpose.msra.mxu0 0.0
      %413 = vmatprep.subr.mxu0 0.0
      %414 = vmatpush2.xpose.msra.mxu0 0.0
      %415 = vmatprep.mubr.f32.mxu0 0.0
      %416 = vmatmul.mubr.f32.gmra.mxu0 %v346
      %v417 = vpop.f32.mrf.mxu0
      %v418 = vadd.f32 0.0, %v417
      %v419 = vpop.f32.mrf.mxu0
      %420 = vdwg.mxu0
      %v421 = vld [vmem:[#allocation2] sm:$0xff]
      %v422 = vsel %vm344, %v418, -inf
      %423 = vmax.xlane.f32.xlu0 %v422
      %v424 = vpop.xlane.xlu0 %423
      %v425 = vmax.f32 %v421, %v424
      %v426 = vsub.f32 %v421, %v425
      %v427 = vmul.f32 %v426, 1.442695
      %v428 = vpow.pop %v427
      %430 = vset.pattern.permute.xlu0 0
      %431 = vperm.xlu0 %430, %v425
      %v432 = vpop.permute.xlu0 %431
      %v434 = vsub.f32 %v418, %v432
      %v435 = vmul.f32 %v434, 1.442695
      %v436 = vpow.pop %v435
      %v437 = vld [vmem:[#allocation3] sm:$0xff]
      %v438 = vmul.f32 %v428, %v437
      %v439 = vsel %vm344, %v436, 0.0
      %440 = vadd.xlane.f32.xlu0 %v439
      %v441 = vpop.xlane.xlu0 %440
      %v442 = vadd.f32 %v438, %v441
      %vm443 = vcmask 7168
      %444 = vst.msk [vmem:[#allocation3] sm:$0xff] %vm443, %v442
      %v445 = vld [vmem:[#allocation4] sm:$0xff]
      %447 = vset.pattern.permute.xlu0 0
      %448 = vperm.xlu0 %447, %v428
      %v449 = vpop.permute.xlu0 %448
      %v451 = vmul.f32 %v449, %v445
      %v452 = vld [vmem:[%s320] sm:$0xff]
      %v454 = vsel %vm344, %v436, 0
      %456 = vmatprep.subr.mxu0 0.0
      %457 = vmatpush1.msra.mxu0 0.0
      %458 = vmatprep.subr.mxu0 0.0
      %459 = vmatpush1.msra.mxu0 0.0
      %460 = vmatprep.subr.mxu0 0.0
      %461 = vmatpush1.msra.mxu0 0.0
      %462 = vmatprep.subr.mxu0 0.0
      %463 = vmatpush1.msra.mxu0 0.0
      %464 = vmatprep.subr.mxu0 0.0
      %465 = vmatpush1.msra.mxu0 0.0
      %466 = vmatprep.subr.mxu0 0.0
      %467 = vmatpush1.msra.mxu0 0.0
      %468 = vmatprep.subr.mxu0 0.0
      %469 = vmatpush1.msra.mxu0 0.0
      %470 = vmatprep.subr.mxu0 0.0
      %471 = vmatpush1.msra.mxu0 0.0
      %472 = vmatprep.subr.mxu0 0.0
      %473 = vmatpush1.msra.mxu0 0.0
      %474 = vmatprep.subr.mxu0 0.0
      %475 = vmatpush1.msra.mxu0 0.0
      %476 = vmatprep.subr.mxu0 0.0
      %477 = vmatpush1.msra.mxu0 0.0
      %478 = vmatprep.subr.mxu0 0.0
      %479 = vmatpush1.msra.mxu0 0.0
      %480 = vmatprep.subr.mxu0 0.0
      %481 = vmatpush1.msra.mxu0 0.0
      %482 = vmatprep.subr.mxu0 0.0
      %483 = vmatpush1.msra.mxu0 0.0
      %484 = vmatprep.subr.mxu0 0.0
      %485 = vmatpush1.msra.mxu0 0.0
      %486 = vmatprep.subr.mxu0 0.0
      %487 = vmatpush1.msra.mxu0 %v452
      %488 = vmatprep.subr.mxu0 0.0
      %489 = vmatpush2.msra.mxu0 0.0
      %490 = vmatprep.subr.mxu0 0.0
      %491 = vmatpush2.msra.mxu0 0.0
      %492 = vmatprep.subr.mxu0 0.0
      %493 = vmatpush2.msra.mxu0 0.0
      %494 = vmatprep.subr.mxu0 0.0
      %495 = vmatpush2.msra.mxu0 0.0
      %496 = vmatprep.subr.mxu0 0.0
      %497 = vmatpush2.msra.mxu0 0.0
      %498 = vmatprep.subr.mxu0 0.0
      %499 = vmatpush2.msra.mxu0 0.0
      %500 = vmatprep.subr.mxu0 0.0
      %501 = vmatpush2.msra.mxu0 0.0
      %502 = vmatprep.subr.mxu0 0.0
      %503 = vmatpush2.msra.mxu0 0.0
      %504 = vmatprep.subr.mxu0 0.0
      %505 = vmatpush2.msra.mxu0 0.0
      %506 = vmatprep.subr.mxu0 0.0
      %507 = vmatpush2.msra.mxu0 0.0
      %508 = vmatprep.subr.mxu0 0.0
      %509 = vmatpush2.msra.mxu0 0.0
      %510 = vmatprep.subr.mxu0 0.0
      %511 = vmatpush2.msra.mxu0 0.0
      %512 = vmatprep.subr.mxu0 0.0
      %513 = vmatpush2.msra.mxu0 0.0
      %514 = vmatprep.subr.mxu0 0.0
      %515 = vmatpush2.msra.mxu0 0.0
      %516 = vmatprep.subr.mxu0 0.0
      %517 = vmatpush2.msra.mxu0 0.0
      %518 = vmatprep.subr.mxu0 0.0
      %519 = vmatpush2.msra.mxu0 0.0
      %520 = vmatprep.mubr.f32.mxu0 0.0
      %521 = vmatmul.mubr.f32.gmra.mxu0 %v454
      %v522 = vpop.f32.mrf.mxu0
      %v523 = vadd.f32 0.0, %v522
      %v524 = vpop.f32.mrf.mxu0
      %525 = vdwg.mxu0
      %v526 = vadd.f32 %v451, %v523
      %527 = vst.msk [vmem:[#allocation4] sm:$0xff] %vm344, %v526
      %528 = vst.msk [vmem:[#allocation2] sm:$0xff] %vm443, %v425
      // Predicated region
      $region37: #{transformer_block_forward.6} parent=31 // pred_check
        %p529 = pneg %p333
      $region38: #{transformer_block_forward.6} parent=31 // pred_check_branch
        %531 = sbr.rel (%p529) target = $region40
      $region39: #{transformer_block_forward.6} parent=31 // pred_region
        %v532 = vld [vmem:[#allocation3] sm:$0xff]
        %v533 = vrcp.pop %v532
        %v534 = vld [vmem:[#allocation4] sm:$0xff]
        %536 = vset.pattern.permute.xlu0 0
        %537 = vperm.xlu0 %536, %v533
        %v538 = vpop.permute.xlu0 %537
        %v540 = vmul.f32 %v534, %v538
        %541 = vst.msk [vmem:[%s332] sm:$0xff] %vm344, %v540
      $region40: #{transformer_block_forward.6} parent=31 // pred_fallthru
        _
      %p542 = scmp.lt.s32.totalorder %s20, 1
      %s543 = scalar_select %p542, %s20, 1
      %p544 = scmp.lt.s32.totalorder %s21, 3
      %s545 = scalar_select %p544, %s21, 3
      %p546 = scmp.lt.s32.totalorder %s22, 0
      %s547 = scalar_select %p546, %s22, 0
      %s548 = sadd.s32 %s547, %s545
      %s549 = smul.addr %s543, 4
      %s550 = sadd.s32 %s548, %s549
      %s551 = smul.addr %s550, 8
      %s552 = scalar_lea.vmem %s3, %s551
      // Predicated region
      $region41: #{transformer_block_forward.6} parent=31 // pred_check
        %p553 = pneg %p156
      $region42: #{transformer_block_forward.6} parent=31 // pred_check_branch
        %555 = sbr.rel (%p553) target = $region44
      $region43: #{transformer_block_forward.6} parent=31 // pred_region
        _
      $region44: #{transformer_block_forward.6} parent=31 // pred_fallthru
        _
    $region32: #{transformer_block_forward.6} parent=5 // pred_fallthru
      _
    %p556 = scmp.le.s32.totalorder 2, %s9
    // Predicated region
    $region45: #{transformer_block_forward.6} parent=5 // pred_check
      %p557 = pneg %p556
    $region46: #{transformer_block_forward.6} parent=5 // pred_check_branch
      %559 = sbr.rel (%p557) target = $region48
    $region47: #{transformer_block_forward.6} parent=5 // pred_region
      %s560 = ssub.s32 %s9, 2
      // Predicated region
      $region49: #{transformer_block_forward.6} parent=47 // pred_check
        %p561 = pneg %p162
      $region50: #{transformer_block_forward.6} parent=47 // pred_check_branch
        %563 = sbr.rel (%p561) target = $region52
      $region51: #{transformer_block_forward.6} parent=47 // pred_region
        %p564 = scmp.lt.s32.totalorder %s24, 1
        %s565 = scalar_select %p564, %s24, 1
        %p566 = scmp.lt.s32.totalorder %s25, 3
        %s567 = scalar_select %p566, %s25, 3
        %p568 = scmp.lt.s32.totalorder %s26, 0
        %s569 = scalar_select %p568, %s26, 0
        %s570 = sadd.s32 %s569, %s567
        %s571 = smul.addr %s565, 4
        %s572 = sadd.s32 %s570, %s571
        %s573 = smul.addr %s572, 8
        %s574 = scalar_lea.vmem %s3, %s573
      $region52: #{transformer_block_forward.6} parent=47 // pred_fallthru
        _
    $region48: #{transformer_block_forward.6} parent=5 // pred_fallthru
      _
  $region6: #{transformer_block_forward.6} parent=0 // loop_footer
    %s13 = sadd.s32 1, %s9
  $region7: #{transformer_block_forward.6} parent=0 // loop_footer_branch
    %8 = sbr.rel target = $region3
  $region8: #{transformer_block_forward.6} parent=0 // loop_exit
    _

// kernel: transformer_block_forward.7
$region0: #{transformer_block_forward.7}
  #allocation0 [shape = 'u32[]', space=smem, size = 0x4, offset = 0x4, fixed_abs, tag = 'smem constant byte address 0x4 - core index']
  #allocation1 [shape = 'u32[144,128]{1,0:T(1,128)}', space=vmem, size = 0x12000, scoped, tag = 'internal scratch']
  #allocation2 [shape = 'f32[16,32]{1,0:T(8,128)}', space=vmem, size = 0x2000, scoped, tag = 'scratch operand']
  %s0 = inlined_call_operand.vmem [shape: f32[16,32], index: 0, kind: input, shape index: {}]
  %s1 = inlined_call_operand.vmem [shape: f32[32,32], index: 1, kind: input, shape index: {}]
  %s2 = inlined_call_operand.vmem [shape: f32[1,32], index: 2, kind: input, shape index: {}]
  %s3 = inlined_call_operand.vmem [shape: f32[16,32], index: 3, kind: input, shape index: {}]
  %s4 = inlined_call_operand.vmem [shape: f32[1,32], index: 4, kind: input, shape index: {}]
  %s5 = inlined_call_operand.vmem [shape: f32[1,32], index: 5, kind: input, shape index: {}]
  %s6 = inlined_call_operand.vmem [shape: f32[16,32], index: 6, kind: output, shape index: {}]
  %s7 = sld [smem:[#allocation0]]
  $region42: #{transformer_block_forward.7} parent=0
    _
  %s9 = ssub.s32 1, %s7
  %s10 = scalar_select 0, %s9, %s7
  // Predicated region
  $region2: #{transformer_block_forward.7} parent=0 // pred_check
    _
  $region3: #{transformer_block_forward.7} parent=0 // pred_check_branch
    %12 = sbr.rel (0) target = $region5
  $region4: #{transformer_block_forward.7} parent=0 // pred_region
    _
  $region5: #{transformer_block_forward.7} parent=0 // pred_fallthru
    _
  // Predicated region
  $region6: #{transformer_block_forward.7} parent=0 // pred_check
    _
  $region7: #{transformer_block_forward.7} parent=0 // pred_check_branch
    %14 = sbr.rel (0) target = $region9
  $region8: #{transformer_block_forward.7} parent=0 // pred_region
    _
  $region9: #{transformer_block_forward.7} parent=0 // pred_fallthru
    _
  // Predicated region
  $region10: #{transformer_block_forward.7} parent=0 // pred_check
    _
  $region11: #{transformer_block_forward.7} parent=0 // pred_check_branch
    %16 = sbr.rel (0) target = $region13
  $region12: #{transformer_block_forward.7} parent=0 // pred_region
    _
  $region13: #{transformer_block_forward.7} parent=0 // pred_fallthru
    _
  // Predicated region
  $region14: #{transformer_block_forward.7} parent=0 // pred_check
    _
  $region15: #{transformer_block_forward.7} parent=0 // pred_check_branch
    %18 = sbr.rel (0) target = $region17
  $region16: #{transformer_block_forward.7} parent=0 // pred_region
    _
  $region17: #{transformer_block_forward.7} parent=0 // pred_fallthru
    _
  // Predicated region
  $region18: #{transformer_block_forward.7} parent=0 // pred_check
    _
  $region19: #{transformer_block_forward.7} parent=0 // pred_check_branch
    %20 = sbr.rel (0) target = $region21
  $region20: #{transformer_block_forward.7} parent=0 // pred_region
    _
  $region21: #{transformer_block_forward.7} parent=0 // pred_fallthru
    _
  // Predicated region
  $region22: #{transformer_block_forward.7} parent=0 // pred_check
    _
  $region23: #{transformer_block_forward.7} parent=0 // pred_check_branch
    %22 = sbr.rel (0) target = $region25
  $region24: #{transformer_block_forward.7} parent=0 // pred_region
    _
  $region25: #{transformer_block_forward.7} parent=0 // pred_fallthru
    _
  %p23 = scmp.eq.s32.totalorder 0, 0
  // Predicated region
  $region26: #{transformer_block_forward.7} parent=0 // pred_check
    %p24 = pneg %p23
  $region27: #{transformer_block_forward.7} parent=0 // pred_check_branch
    %26 = sbr.rel (%p24) target = $region29
  $region28: #{transformer_block_forward.7} parent=0 // pred_region
    %vm27 = vcmask 261120
    %28 = vst.msk [vmem:[#allocation2] sm:$0xff] %vm27, 0.0
    %29 = vst.msk [vmem:[#allocation2 + $0x8] sm:$0xff] %vm27, 0.0
  $region29: #{transformer_block_forward.7} parent=0 // pred_fallthru
    _
  %v30 = vld [vmem:[#allocation2] sm:$0xff]
  %v31 = vld [vmem:[#allocation2 + $0x8] sm:$0xff]
  %v32 = vld [vmem:[%s0] sm:$0xff]
  %v33 = vld [vmem:[%s0 + $0x8] sm:$0xff]
  %v34 = vld [vmem:[%s1] sm:$0xff]
  %v35 = vld [vmem:[%s1 + $0x8] sm:$0xff]
  %v36 = vld [vmem:[%s1 + $0x10] sm:$0xff]
  %v37 = vld [vmem:[%s1 + $0x18] sm:$0xff]
  %vm38 = vcmask 261120
  %v40 = vsel %vm38, %v32, 0
  %v43 = vsel %vm38, %v33, 0
  %45 = vmatprep.subr.mxu0 0.0
  %46 = vmatpush1.msra.mxu0 0.0
  %47 = vmatprep.subr.mxu0 0.0
  %48 = vmatpush1.msra.mxu0 0.0
  %49 = vmatprep.subr.mxu0 0.0
  %50 = vmatpush1.msra.mxu0 0.0
  %51 = vmatprep.subr.mxu0 0.0
  %52 = vmatpush1.msra.mxu0 0.0
  %53 = vmatprep.subr.mxu0 0.0
  %54 = vmatpush1.msra.mxu0 0.0
  %55 = vmatprep.subr.mxu0 0.0
  %56 = vmatpush1.msra.mxu0 0.0
  %57 = vmatprep.subr.mxu0 0.0
  %58 = vmatpush1.msra.mxu0 0.0
  %59 = vmatprep.subr.mxu0 0.0
  %60 = vmatpush1.msra.mxu0 0.0
  %61 = vmatprep.subr.mxu0 0.0
  %62 = vmatpush1.msra.mxu0 0.0
  %63 = vmatprep.subr.mxu0 0.0
  %64 = vmatpush1.msra.mxu0 0.0
  %65 = vmatprep.subr.mxu0 0.0
  %66 = vmatpush1.msra.mxu0 0.0
  %67 = vmatprep.subr.mxu0 0.0
  %68 = vmatpush1.msra.mxu0 0.0
  %69 = vmatprep.subr.mxu0 0.0
  %70 = vmatpush1.msra.mxu0 %v37
  %71 = vmatprep.subr.mxu0 0.0
  %72 = vmatpush1.msra.mxu0 %v36
  %73 = vmatprep.subr.mxu0 0.0
  %74 = vmatpush1.msra.mxu0 %v35
  %75 = vmatprep.subr.mxu0 0.0
  %76 = vmatpush1.msra.mxu0 %v34
  %77 = vmatprep.subr.mxu0 0.0
  %78 = vmatpush2.msra.mxu0 0.0
  %79 = vmatprep.subr.mxu0 0.0
  %80 = vmatpush2.msra.mxu0 0.0
  %81 = vmatprep.subr.mxu0 0.0
  %82 = vmatpush2.msra.mxu0 0.0
  %83 = vmatprep.subr.mxu0 0.0
  %84 = vmatpush2.msra.mxu0 0.0
  %85 = vmatprep.subr.mxu0 0.0
  %86 = vmatpush2.msra.mxu0 0.0
  %87 = vmatprep.subr.mxu0 0.0
  %88 = vmatpush2.msra.mxu0 0.0
  %89 = vmatprep.subr.mxu0 0.0
  %90 = vmatpush2.msra.mxu0 0.0
  %91 = vmatprep.subr.mxu0 0.0
  %92 = vmatpush2.msra.mxu0 0.0
  %93 = vmatprep.subr.mxu0 0.0
  %94 = vmatpush2.msra.mxu0 0.0
  %95 = vmatprep.subr.mxu0 0.0
  %96 = vmatpush2.msra.mxu0 0.0
  %97 = vmatprep.subr.mxu0 0.0
  %98 = vmatpush2.msra.mxu0 0.0
  %99 = vmatprep.subr.mxu0 0.0
  %100 = vmatpush2.msra.mxu0 0.0
  %101 = vmatprep.subr.mxu0 0.0
  %102 = vmatpush2.msra.mxu0 0.0
  %103 = vmatprep.subr.mxu0 0.0
  %104 = vmatpush2.msra.mxu0 0.0
  %105 = vmatprep.subr.mxu0 0.0
  %106 = vmatpush2.msra.mxu0 0.0
  %107 = vmatprep.subr.mxu0 0.0
  %108 = vmatpush2.msra.mxu0 0.0
  %109 = vmatprep.mubr.f32.mxu0 0.0
  %110 = vmatmul.mubr.f32.gmra.mxu0 %v40
  %v111 = vpop.f32.mrf.mxu0
  %v112 = vadd.f32 0.0, %v111
  %v113 = vpop.f32.mrf.mxu0
  %114 = vmatprep.mubr.f32.mxu0 0.0
  %115 = vmatmul.mubr.f32.gmra.mxu0 %v43
  %v116 = vpop.f32.mrf.mxu0
  %v117 = vadd.f32 0.0, %v116
  %v118 = vpop.f32.mrf.mxu0
  %119 = vdwg.mxu0
  %v120 = vadd.f32 %v30, %v112
  %v121 = vadd.f32 %v31, %v117
  %122 = vst.msk [vmem:[#allocation2] sm:$0xff] %vm38, %v120
  %123 = vst.msk [vmem:[#allocation2 + $0x8] sm:$0xff] %vm38, %v121
  // Predicated region
  $region30: #{transformer_block_forward.7} parent=0 // pred_check
    %p124 = pneg %p23
  $region31: #{transformer_block_forward.7} parent=0 // pred_check_branch
    %126 = sbr.rel (%p124) target = $region33
  $region32: #{transformer_block_forward.7} parent=0 // pred_region
    %v127 = vld [vmem:[#allocation2] sm:$0xff]
    %v128 = vld [vmem:[#allocation2 + $0x8] sm:$0xff]
    %v129 = vld [vmem:[%s2] sm:$0x1]
    %v131 = vlaneseq
    %v132 = vshrl.u32 %v131, 7
    %v133 = vsub.s32 0, %v132
    %v134 = vrot.slane %v129, %v133
    %v136 = vadd.f32 %v127, %v134
    %v137 = vadd.f32 %v128, %v134
    %v138 = vld [vmem:[%s3] sm:$0xff]
    %v139 = vld [vmem:[%s3 + $0x8] sm:$0xff]
    %v140 = vadd.f32 %v136, %v138
    %v141 = vadd.f32 %v137, %v139
    %v142 = vsel %vm38, %v140, 0.0
    %143 = vadd.xlane.f32.xlu0 %v142
    %v144 = vpop.xlane.xlu0 %143
    %v145 = vsel %vm38, %v141, 0.0
    %146 = vadd.xlane.f32.xlu0 %v145
    %v147 = vpop.xlane.xlu0 %146
    %v148 = vrcp.pop 32.0
    %v149 = vmul.f32 %v144, %v148
    %v150 = vmul.f32 %v147, %v148
    %v151 = vsub.f32 %v140, %v149
    %v152 = vsub.f32 %v141, %v150
    %v153 = vmul.f32 %v151, %v151
    %v154 = vmul.f32 %v152, %v152
    %v155 = vsel %vm38, %v153, 0.0
    %156 = vadd.xlane.f32.xlu0 %v155
    %v157 = vpop.xlane.xlu0 %156
    %v158 = vsel %vm38, %v154, 0.0
    %159 = vadd.xlane.f32.xlu0 %v158
    %v160 = vpop.xlane.xlu0 %159
    %v161 = vmul.f32 %v157, %v148
    %v162 = vmul.f32 %v160, %v148
    %v163 = vadd.f32 %v161, 1e-05
    %v164 = vadd.f32 %v162, 1e-05
    %v165 = vrsqrt.pop %v163
    %v166 = vrsqrt.pop %v164
    %v167 = vmul.f32 %v151, %v165
    %v168 = vmul.f32 %v152, %v166
    %v169 = vld [vmem:[%s4] sm:$0x1]
    %v171 = vlaneseq
    %v172 = vshrl.u32 %v171, 7
    %v173 = vsub.s32 0, %v172
    %v174 = vrot.slane %v169, %v173
    %v176 = vmul.f32 %v167, %v174
    %v177 = vmul.f32 %v168, %v174
    %v178 = vld [vmem:[%s5] sm:$0x1]
    %v180 = vlaneseq
    %v181 = vshrl.u32 %v180, 7
    %v182 = vsub.s32 0, %v181
    %v183 = vrot.slane %v178, %v182
    %v185 = vadd.f32 %v176, %v183
    %v186 = vadd.f32 %v177, %v183
    %187 = vst.msk [vmem:[%s6] sm:$0xff] %vm38, %v185
    %188 = vst.msk [vmem:[%s6 + $0x8] sm:$0xff] %vm38, %v186
  $region33: #{transformer_block_forward.7} parent=0 // pred_fallthru
    _
  // Predicated region
  $region34: #{transformer_block_forward.7} parent=0 // pred_check
    _
  $region35: #{transformer_block_forward.7} parent=0 // pred_check_branch
    %190 = sbr.rel (0) target = $region37
  $region36: #{transformer_block_forward.7} parent=0 // pred_region
    _
  $region37: #{transformer_block_forward.7} parent=0 // pred_fallthru
    _
  // Predicated region
  $region38: #{transformer_block_forward.7} parent=0 // pred_check
    _
  $region39: #{transformer_block_forward.7} parent=0 // pred_check_branch
    %192 = sbr.rel (0) target = $region41
  $region40: #{transformer_block_forward.7} parent=0 // pred_region
    _
  $region41: #{transformer_block_forward.7} parent=0 // pred_fallthru
    _

// kernel: transformer_block_forward.8
$region0: #{transformer_block_forward.8}
  #allocation0 [shape = 'u32[]', space=smem, size = 0x4, offset = 0x4, fixed_abs, tag = 'smem constant byte address 0x4 - core index']
  #allocation1 [shape = 'u32[144,128]{1,0:T(1,128)}', space=vmem, size = 0x12000, scoped, tag = 'internal scratch']
  #allocation2 [shape = 'f32[16,64]{1,0:T(8,128)}', space=vmem, size = 0x2000, scoped, tag = 'scratch operand']
  %s0 = inlined_call_operand.vmem [shape: f32[16,32], index: 0, kind: input, shape index: {}]
  %s1 = inlined_call_operand.vmem [shape: f32[32,64], index: 1, kind: input, shape index: {}]
  %s2 = inlined_call_operand.vmem [shape: f32[1,64], index: 2, kind: input, shape index: {}]
  %s3 = inlined_call_operand.vmem [shape: f32[16,64], index: 3, kind: output, shape index: {}]
  %s4 = sld [smem:[#allocation0]]
  $region30: #{transformer_block_forward.8} parent=0
    _
  %s6 = ssub.s32 1, %s4
  %s7 = scalar_select 0, %s6, %s4
  // Predicated region
  $region2: #{transformer_block_forward.8} parent=0 // pred_check
    _
  $region3: #{transformer_block_forward.8} parent=0 // pred_check_branch
    %9 = sbr.rel (0) target = $region5
  $region4: #{transformer_block_forward.8} parent=0 // pred_region
    _
  $region5: #{transformer_block_forward.8} parent=0 // pred_fallthru
    _
  // Predicated region
  $region6: #{transformer_block_forward.8} parent=0 // pred_check
    _
  $region7: #{transformer_block_forward.8} parent=0 // pred_check_branch
    %11 = sbr.rel (0) target = $region9
  $region8: #{transformer_block_forward.8} parent=0 // pred_region
    _
  $region9: #{transformer_block_forward.8} parent=0 // pred_fallthru
    _
  // Predicated region
  $region10: #{transformer_block_forward.8} parent=0 // pred_check
    _
  $region11: #{transformer_block_forward.8} parent=0 // pred_check_branch
    %13 = sbr.rel (0) target = $region13
  $region12: #{transformer_block_forward.8} parent=0 // pred_region
    _
  $region13: #{transformer_block_forward.8} parent=0 // pred_fallthru
    _
  %p14 = scmp.eq.s32.totalorder 0, 0
  // Predicated region
  $region14: #{transformer_block_forward.8} parent=0 // pred_check
    %p15 = pneg %p14
  $region15: #{transformer_block_forward.8} parent=0 // pred_check_branch
    %17 = sbr.rel (%p15) target = $region17
  $region16: #{transformer_block_forward.8} parent=0 // pred_region
    %vm18 = vcmask 523264
    %19 = vst.msk [vmem:[#allocation2] sm:$0xff] %vm18, 0.0
    %20 = vst.msk [vmem:[#allocation2 + $0x8] sm:$0xff] %vm18, 0.0
  $region17: #{transformer_block_forward.8} parent=0 // pred_fallthru
    _
  %v21 = vld [vmem:[#allocation2] sm:$0xff]
  %v22 = vld [vmem:[#allocation2 + $0x8] sm:$0xff]
  %v23 = vld [vmem:[%s0] sm:$0xff]
  %v24 = vld [vmem:[%s0 + $0x8] sm:$0xff]
  %v25 = vld [vmem:[%s1] sm:$0xff]
  %v26 = vld [vmem:[%s1 + $0x8] sm:$0xff]
  %v27 = vld [vmem:[%s1 + $0x10] sm:$0xff]
  %v28 = vld [vmem:[%s1 + $0x18] sm:$0xff]
  %vm29 = vcmask 261120
  %v31 = vsel %vm29, %v23, 0
  %v34 = vsel %vm29, %v24, 0
  %36 = vmatprep.subr.mxu0 0.0
  %37 = vmatpush1.msra.mxu0 0.0
  %38 = vmatprep.subr.mxu0 0.0
  %39 = vmatpush1.msra.mxu0 0.0
  %40 = vmatprep.subr.mxu0 0.0
  %41 = vmatpush1.msra.mxu0 0.0
  %42 = vmatprep.subr.mxu0 0.0
  %43 = vmatpush1.msra.mxu0 0.0
  %44 = vmatprep.subr.mxu0 0.0
  %45 = vmatpush1.msra.mxu0 0.0
  %46 = vmatprep.subr.mxu0 0.0
  %47 = vmatpush1.msra.mxu0 0.0
  %48 = vmatprep.subr.mxu0 0.0
  %49 = vmatpush1.msra.mxu0 0.0
  %50 = vmatprep.subr.mxu0 0.0
  %51 = vmatpush1.msra.mxu0 0.0
  %52 = vmatprep.subr.mxu0 0.0
  %53 = vmatpush1.msra.mxu0 0.0
  %54 = vmatprep.subr.mxu0 0.0
  %55 = vmatpush1.msra.mxu0 0.0
  %56 = vmatprep.subr.mxu0 0.0
  %57 = vmatpush1.msra.mxu0 0.0
  %58 = vmatprep.subr.mxu0 0.0
  %59 = vmatpush1.msra.mxu0 0.0
  %60 = vmatprep.subr.mxu0 0.0
  %61 = vmatpush1.msra.mxu0 %v28
  %62 = vmatprep.subr.mxu0 0.0
  %63 = vmatpush1.msra.mxu0 %v27
  %64 = vmatprep.subr.mxu0 0.0
  %65 = vmatpush1.msra.mxu0 %v26
  %66 = vmatprep.subr.mxu0 0.0
  %67 = vmatpush1.msra.mxu0 %v25
  %68 = vmatprep.subr.mxu0 0.0
  %69 = vmatpush2.msra.mxu0 0.0
  %70 = vmatprep.subr.mxu0 0.0
  %71 = vmatpush2.msra.mxu0 0.0
  %72 = vmatprep.subr.mxu0 0.0
  %73 = vmatpush2.msra.mxu0 0.0
  %74 = vmatprep.subr.mxu0 0.0
  %75 = vmatpush2.msra.mxu0 0.0
  %76 = vmatprep.subr.mxu0 0.0
  %77 = vmatpush2.msra.mxu0 0.0
  %78 = vmatprep.subr.mxu0 0.0
  %79 = vmatpush2.msra.mxu0 0.0
  %80 = vmatprep.subr.mxu0 0.0
  %81 = vmatpush2.msra.mxu0 0.0
  %82 = vmatprep.subr.mxu0 0.0
  %83 = vmatpush2.msra.mxu0 0.0
  %84 = vmatprep.subr.mxu0 0.0
  %85 = vmatpush2.msra.mxu0 0.0
  %86 = vmatprep.subr.mxu0 0.0
  %87 = vmatpush2.msra.mxu0 0.0
  %88 = vmatprep.subr.mxu0 0.0
  %89 = vmatpush2.msra.mxu0 0.0
  %90 = vmatprep.subr.mxu0 0.0
  %91 = vmatpush2.msra.mxu0 0.0
  %92 = vmatprep.subr.mxu0 0.0
  %93 = vmatpush2.msra.mxu0 0.0
  %94 = vmatprep.subr.mxu0 0.0
  %95 = vmatpush2.msra.mxu0 0.0
  %96 = vmatprep.subr.mxu0 0.0
  %97 = vmatpush2.msra.mxu0 0.0
  %98 = vmatprep.subr.mxu0 0.0
  %99 = vmatpush2.msra.mxu0 0.0
  %100 = vmatprep.mubr.f32.mxu0 0.0
  %101 = vmatmul.mubr.f32.gmra.mxu0 %v31
  %v102 = vpop.f32.mrf.mxu0
  %v103 = vadd.f32 0.0, %v102
  %v104 = vpop.f32.mrf.mxu0
  %105 = vmatprep.mubr.f32.mxu0 0.0
  %106 = vmatmul.mubr.f32.gmra.mxu0 %v34
  %v107 = vpop.f32.mrf.mxu0
  %v108 = vadd.f32 0.0, %v107
  %v109 = vpop.f32.mrf.mxu0
  %110 = vdwg.mxu0
  %v111 = vadd.f32 %v21, %v103
  %v112 = vadd.f32 %v22, %v108
  %vm113 = vcmask 523264
  %114 = vst.msk [vmem:[#allocation2] sm:$0xff] %vm113, %v111
  %115 = vst.msk [vmem:[#allocation2 + $0x8] sm:$0xff] %vm113, %v112
  // Predicated region
  $region18: #{transformer_block_forward.8} parent=0 // pred_check
    %p116 = pneg %p14
  $region19: #{transformer_block_forward.8} parent=0 // pred_check_branch
    %118 = sbr.rel (%p116) target = $region21
  $region20: #{transformer_block_forward.8} parent=0 // pred_region
    %v119 = vld [vmem:[#allocation2] sm:$0xff]
    %v120 = vld [vmem:[#allocation2 + $0x8] sm:$0xff]
    %v121 = vld [vmem:[%s2] sm:$0x1]
    %v123 = vlaneseq
    %v124 = vshrl.u32 %v123, 7
    %v125 = vsub.s32 0, %v124
    %v126 = vrot.slane %v121, %v125
    %v128 = vadd.f32 %v119, %v126
    %v129 = vadd.f32 %v120, %v126
    %v130 = vmax.f32 %v128, 0.0
    %v131 = vmax.f32 %v129, 0.0
    %132 = vst.msk [vmem:[%s3] sm:$0xff] %vm113, %v130
    %133 = vst.msk [vmem:[%s3 + $0x8] sm:$0xff] %vm113, %v131
  $region21: #{transformer_block_forward.8} parent=0 // pred_fallthru
    _
  // Predicated region
  $region22: #{transformer_block_forward.8} parent=0 // pred_check
    _
  $region23: #{transformer_block_forward.8} parent=0 // pred_check_branch
    %135 = sbr.rel (0) target = $region25
  $region24: #{transformer_block_forward.8} parent=0 // pred_region
    _
  $region25: #{transformer_block_forward.8} parent=0 // pred_fallthru
    _
  // Predicated region
  $region26: #{transformer_block_forward.8} parent=0 // pred_check
    _
  $region27: #{transformer_block_forward.8} parent=0 // pred_check_branch
    %137 = sbr.rel (0) target = $region29
  $region28: #{transformer_block_forward.8} parent=0 // pred_region
    _
  $region29: #{transformer_block_forward.8} parent=0 // pred_fallthru
    _

// kernel: transformer_block_forward.9
$region0: #{transformer_block_forward.9}
  #allocation0 [shape = 'u32[]', space=smem, size = 0x4, offset = 0x4, fixed_abs, tag = 'smem constant byte address 0x4 - core index']
  #allocation1 [shape = 'u32[144,128]{1,0:T(1,128)}', space=vmem, size = 0x12000, scoped, tag = 'internal scratch']
  #allocation2 [shape = 'f32[16,32]{1,0:T(8,128)}', space=vmem, size = 0x2000, scoped, tag = 'scratch operand']
  %s0 = inlined_call_operand.vmem [shape: f32[16,64], index: 0, kind: input, shape index: {}]
  %s1 = inlined_call_operand.vmem [shape: f32[64,32], index: 1, kind: input, shape index: {}]
  %s2 = inlined_call_operand.vmem [shape: f32[1,32], index: 2, kind: input, shape index: {}]
  %s3 = inlined_call_operand.vmem [shape: f32[16,32], index: 3, kind: input, shape index: {}]
  %s4 = inlined_call_operand.vmem [shape: f32[1,32], index: 4, kind: input, shape index: {}]
  %s5 = inlined_call_operand.vmem [shape: f32[1,32], index: 5, kind: input, shape index: {}]
  %s6 = inlined_call_operand.hbm [shape: f32[16,32], index: 6, kind: output, shape index: {}]
  %s7 = sld [smem:[#allocation0]]
  $region42: #{transformer_block_forward.9} parent=0
    _
  %s9 = ssub.s32 1, %s7
  %s10 = scalar_select 0, %s9, %s7
  $region1: #{transformer_block_forward.9} parent=0
    #allocation3 [shape = 'u8[8192]{0}', space=vmem, size = 0x2000, scoped, tag = 'output window, operand 0, single buffered']
    #allocation4 [shape = 's32[1]{0}', space=sflag, size = 0x4, scoped, tag = 'scoped memory for transformer_block_forward.9']
    %11 = vsyncpa [#allocation4], 0
    // Predicated region
    $region2: #{transformer_block_forward.9} parent=1 // pred_check
      _
    $region3: #{transformer_block_forward.9} parent=1 // pred_check_branch
      %13 = sbr.rel (0) target = $region5
    $region4: #{transformer_block_forward.9} parent=1 // pred_region
      _
    $region5: #{transformer_block_forward.9} parent=1 // pred_fallthru
      _
    // Predicated region
    $region6: #{transformer_block_forward.9} parent=1 // pred_check
      _
    $region7: #{transformer_block_forward.9} parent=1 // pred_check_branch
      %15 = sbr.rel (0) target = $region9
    $region8: #{transformer_block_forward.9} parent=1 // pred_region
      _
    $region9: #{transformer_block_forward.9} parent=1 // pred_fallthru
      _
    // Predicated region
    $region10: #{transformer_block_forward.9} parent=1 // pred_check
      _
    $region11: #{transformer_block_forward.9} parent=1 // pred_check_branch
      %17 = sbr.rel (0) target = $region13
    $region12: #{transformer_block_forward.9} parent=1 // pred_region
      _
    $region13: #{transformer_block_forward.9} parent=1 // pred_fallthru
      _
    // Predicated region
    $region14: #{transformer_block_forward.9} parent=1 // pred_check
      _
    $region15: #{transformer_block_forward.9} parent=1 // pred_check_branch
      %19 = sbr.rel (0) target = $region17
    $region16: #{transformer_block_forward.9} parent=1 // pred_region
      _
    $region17: #{transformer_block_forward.9} parent=1 // pred_fallthru
      _
    // Predicated region
    $region18: #{transformer_block_forward.9} parent=1 // pred_check
      _
    $region19: #{transformer_block_forward.9} parent=1 // pred_check_branch
      %21 = sbr.rel (0) target = $region21
    $region20: #{transformer_block_forward.9} parent=1 // pred_region
      _
    $region21: #{transformer_block_forward.9} parent=1 // pred_fallthru
      _
    // Predicated region
    $region22: #{transformer_block_forward.9} parent=1 // pred_check
      _
    $region23: #{transformer_block_forward.9} parent=1 // pred_check_branch
      %23 = sbr.rel (0) target = $region25
    $region24: #{transformer_block_forward.9} parent=1 // pred_region
      _
    $region25: #{transformer_block_forward.9} parent=1 // pred_fallthru
      _
    %p24 = scmp.eq.s32.totalorder 0, 0
    // Predicated region
    $region26: #{transformer_block_forward.9} parent=1 // pred_check
      %p25 = pneg %p24
    $region27: #{transformer_block_forward.9} parent=1 // pred_check_branch
      %27 = sbr.rel (%p25) target = $region29
    $region28: #{transformer_block_forward.9} parent=1 // pred_region
      %vm28 = vcmask 261120
      %29 = vst.msk [vmem:[#allocation2] sm:$0xff] %vm28, 0.0
      %30 = vst.msk [vmem:[#allocation2 + $0x8] sm:$0xff] %vm28, 0.0
    $region29: #{transformer_block_forward.9} parent=1 // pred_fallthru
      _
    %v31 = vld [vmem:[#allocation2] sm:$0xff]
    %v32 = vld [vmem:[#allocation2 + $0x8] sm:$0xff]
    %v33 = vld [vmem:[%s0] sm:$0xff]
    %v34 = vld [vmem:[%s0 + $0x8] sm:$0xff]
    %v35 = vld [vmem:[%s1] sm:$0xff]
    %v36 = vld [vmem:[%s1 + $0x8] sm:$0xff]
    %v37 = vld [vmem:[%s1 + $0x10] sm:$0xff]
    %v38 = vld [vmem:[%s1 + $0x18] sm:$0xff]
    %v39 = vld [vmem:[%s1 + $0x20] sm:$0xff]
    %v40 = vld [vmem:[%s1 + $0x28] sm:$0xff]
    %v41 = vld [vmem:[%s1 + $0x30] sm:$0xff]
    %v42 = vld [vmem:[%s1 + $0x38] sm:$0xff]
    %vm43 = vcmask 523264
    %v45 = vsel %vm43, %v33, 0
    %v48 = vsel %vm43, %v34, 0
    %50 = vmatprep.subr.mxu0 0.0
    %51 = vmatpush1.msra.mxu0 0.0
    %52 = vmatprep.subr.mxu0 0.0
    %53 = vmatpush1.msra.mxu0 0.0
    %54 = vmatprep.subr.mxu0 0.0
    %55 = vmatpush1.msra.mxu0 0.0
    %56 = vmatprep.subr.mxu0 0.0
    %57 = vmatpush1.msra.mxu0 0.0
    %58 = vmatprep.subr.mxu0 0.0
    %59 = vmatpush1.msra.mxu0 0.0
    %60 = vmatprep.subr.mxu0 0.0
    %61 = vmatpush1.msra.mxu0 0.0
    %62 = vmatprep.subr.mxu0 0.0
    %63 = vmatpush1.msra.mxu0 0.0
    %64 = vmatprep.subr.mxu0 0.0
    %65 = vmatpush1.msra.mxu0 0.0
    %66 = vmatprep.subr.mxu0 0.0
    %67 = vmatpush1.msra.mxu0 %v42
    %68 = vmatprep.subr.mxu0 0.0
    %69 = vmatpush1.msra.mxu0 %v41
    %70 = vmatprep.subr.mxu0 0.0
    %71 = vmatpush1.msra.mxu0 %v40
    %72 = vmatprep.subr.mxu0 0.0
    %73 = vmatpush1.msra.mxu0 %v39
    %74 = vmatprep.subr.mxu0 0.0
    %75 = vmatpush1.msra.mxu0 %v38
    %76 = vmatprep.subr.mxu0 0.0
    %77 = vmatpush1.msra.mxu0 %v37
    %78 = vmatprep.subr.mxu0 0.0
    %79 = vmatpush1.msra.mxu0 %v36
    %80 = vmatprep.subr.mxu0 0.0
    %81 = vmatpush1.msra.mxu0 %v35
    %82 = vmatprep.subr.mxu0 0.0
    %83 = vmatpush2.msra.mxu0 0.0
    %84 = vmatprep.subr.mxu0 0.0
    %85 = vmatpush2.msra.mxu0 0.0
    %86 = vmatprep.subr.mxu0 0.0
    %87 = vmatpush2.msra.mxu0 0.0
    %88 = vmatprep.subr.mxu0 0.0
    %89 = vmatpush2.msra.mxu0 0.0
    %90 = vmatprep.subr.mxu0 0.0
    %91 = vmatpush2.msra.mxu0 0.0
    %92 = vmatprep.subr.mxu0 0.0
    %93 = vmatpush2.msra.mxu0 0.0
    %94 = vmatprep.subr.mxu0 0.0
    %95 = vmatpush2.msra.mxu0 0.0
    %96 = vmatprep.subr.mxu0 0.0
    %97 = vmatpush2.msra.mxu0 0.0
    %98 = vmatprep.subr.mxu0 0.0
    %99 = vmatpush2.msra.mxu0 0.0
    %100 = vmatprep.subr.mxu0 0.0
    %101 = vmatpush2.msra.mxu0 0.0
    %102 = vmatprep.subr.mxu0 0.0
    %103 = vmatpush2.msra.mxu0 0.0
    %104 = vmatprep.subr.mxu0 0.0
    %105 = vmatpush2.msra.mxu0 0.0
    %106 = vmatprep.subr.mxu0 0.0
    %107 = vmatpush2.msra.mxu0 0.0
    %108 = vmatprep.subr.mxu0 0.0
    %109 = vmatpush2.msra.mxu0 0.0
    %110 = vmatprep.subr.mxu0 0.0
    %111 = vmatpush2.msra.mxu0 0.0
    %112 = vmatprep.subr.mxu0 0.0
    %113 = vmatpush2.msra.mxu0 0.0
    %114 = vmatprep.mubr.f32.mxu0 0.0
    %115 = vmatmul.mubr.f32.gmra.mxu0 %v45
    %v116 = vpop.f32.mrf.mxu0
    %v117 = vadd.f32 0.0, %v116
    %v118 = vpop.f32.mrf.mxu0
    %119 = vmatprep.mubr.f32.mxu0 0.0
    %120 = vmatmul.mubr.f32.gmra.mxu0 %v48
    %v121 = vpop.f32.mrf.mxu0
    %v122 = vadd.f32 0.0, %v121
    %v123 = vpop.f32.mrf.mxu0
    %124 = vdwg.mxu0
    %v125 = vadd.f32 %v31, %v117
    %v126 = vadd.f32 %v32, %v122
    %vm127 = vcmask 261120
    %128 = vst.msk [vmem:[#allocation2] sm:$0xff] %vm127, %v125
    %129 = vst.msk [vmem:[#allocation2 + $0x8] sm:$0xff] %vm127, %v126
    // Predicated region
    $region30: #{transformer_block_forward.9} parent=1 // pred_check
      %p130 = pneg %p24
    $region31: #{transformer_block_forward.9} parent=1 // pred_check_branch
      %132 = sbr.rel (%p130) target = $region33
    $region32: #{transformer_block_forward.9} parent=1 // pred_region
      %v133 = vld [vmem:[#allocation2] sm:$0xff]
      %v134 = vld [vmem:[#allocation2 + $0x8] sm:$0xff]
      %v135 = vld [vmem:[%s2] sm:$0x1]
      %v137 = vlaneseq
      %v138 = vshrl.u32 %v137, 7
      %v139 = vsub.s32 0, %v138
      %v140 = vrot.slane %v135, %v139
      %v142 = vadd.f32 %v133, %v140
      %v143 = vadd.f32 %v134, %v140
      %v144 = vld [vmem:[%s3] sm:$0xff]
      %v145 = vld [vmem:[%s3 + $0x8] sm:$0xff]
      %v146 = vadd.f32 %v142, %v144
      %v147 = vadd.f32 %v143, %v145
      %v148 = vsel %vm127, %v146, 0.0
      %149 = vadd.xlane.f32.xlu0 %v148
      %v150 = vpop.xlane.xlu0 %149
      %v151 = vsel %vm127, %v147, 0.0
      %152 = vadd.xlane.f32.xlu0 %v151
      %v153 = vpop.xlane.xlu0 %152
      %v154 = vrcp.pop 32.0
      %v155 = vmul.f32 %v150, %v154
      %v156 = vmul.f32 %v153, %v154
      %v157 = vsub.f32 %v146, %v155
      %v158 = vsub.f32 %v147, %v156
      %v159 = vmul.f32 %v157, %v157
      %v160 = vmul.f32 %v158, %v158
      %v161 = vsel %vm127, %v159, 0.0
      %162 = vadd.xlane.f32.xlu0 %v161
      %v163 = vpop.xlane.xlu0 %162
      %v164 = vsel %vm127, %v160, 0.0
      %165 = vadd.xlane.f32.xlu0 %v164
      %v166 = vpop.xlane.xlu0 %165
      %v167 = vmul.f32 %v163, %v154
      %v168 = vmul.f32 %v166, %v154
      %v169 = vadd.f32 %v167, 1e-05
      %v170 = vadd.f32 %v168, 1e-05
      %v171 = vrsqrt.pop %v169
      %v172 = vrsqrt.pop %v170
      %v173 = vmul.f32 %v157, %v171
      %v174 = vmul.f32 %v158, %v172
      %v175 = vld [vmem:[%s4] sm:$0x1]
      %v177 = vlaneseq
      %v178 = vshrl.u32 %v177, 7
      %v179 = vsub.s32 0, %v178
      %v180 = vrot.slane %v175, %v179
      %v182 = vmul.f32 %v173, %v180
      %v183 = vmul.f32 %v174, %v180
      %v184 = vld [vmem:[%s5] sm:$0x1]
      %v186 = vlaneseq
      %v187 = vshrl.u32 %v186, 7
      %v188 = vsub.s32 0, %v187
      %v189 = vrot.slane %v184, %v188
      %v191 = vadd.f32 %v182, %v189
      %v192 = vadd.f32 %v183, %v189
      %193 = vst.msk [vmem:[#allocation3] sm:$0xff] %vm127, %v191
      %194 = vst.msk [vmem:[#allocation3 + $0x8] sm:$0xff] %vm127, %v192
    $region33: #{transformer_block_forward.9} parent=1 // pred_fallthru
      _
    // Predicated region
    $region34: #{transformer_block_forward.9} parent=1 // pred_check
      _
    $region35: #{transformer_block_forward.9} parent=1 // pred_check_branch
      %196 = sbr.rel (0) target = $region37
    $region36: #{transformer_block_forward.9} parent=1 // pred_region
      %s198 = ssub.s32 256, 256
      %199 = vsyncadd [#allocation4], %s198
      %s200 = sshll.u32 [#allocation3], 4
      %s201 = int_to_ptr.vmem [resolvable:$true] %s200
      %206 = dma.vmem_to_hbm [thread:$0]  %s201, 256, %s6, [#allocation4], 128, 128, 8
    $region37: #{transformer_block_forward.9} parent=1 // pred_fallthru
      _
    // Predicated region
    $region38: #{transformer_block_forward.9} parent=1 // pred_check
      _
    $region39: #{transformer_block_forward.9} parent=1 // pred_check_branch
      %208 = sbr.rel (0) target = $region41
    $region40: #{transformer_block_forward.9} parent=1 // pred_region
      %209 = dma.done [#allocation4], 256
    $region41: #{transformer_block_forward.9} parent=1 // pred_fallthru
      _
    %210 = vsyncpa [#allocation4], 1

</llo_original>
